<compile_context>
chip_gen: v5e
topology: v5e:2x2
jax: 0.10.0
libtpu: 0.0.40
codegen_flags: <defaults>
</compile_context>

<pallas_src>
import functools

import jax
import jax.numpy as jnp
from jax.experimental import pallas as pl
from jax.experimental.pallas import tpu as pltpu


def _sepconv_kernel(x_ref, wf_ref, out_ref, xpad_ref, xs_ref, *, H, W, K, pad):
    """One batch element per grid step.

    x_ref    : (1, Cin, H, W)             unpadded NCHW input block
    wf_ref   : (Cout, K*K*Cin)            fused depthwise*pointwise weights
    out_ref  : (1, Cout, Ho*Wo)           lane-dense output slab
    xpad_ref : (Cin, Hp, Wp)   scratch    zero-padded input
    xs_ref   : (K*K*Cin, Ho*Wo) scratch   im2col slab (matmul RHS)
    """
    Cin = x_ref.shape[1]
    Hp, Wp = H + 2 * pad, W + 2 * pad
    Ho, Wo = Hp - K + 1, Wp - K + 1

    # Zero padding folded into the kernel (no jnp.pad / extra HBM round trip).
    xpad_ref[...] = jnp.zeros_like(xpad_ref)
    xpad_ref[:, pl.ds(pad, H), pl.ds(pad, W)] = x_ref[0]

    # im2col: row (kh*K + kw)*Cin + c holds the shifted window for tap (kh,kw),
    # channel c, flattened over the Ho*Wo output pixels (lane axis).
    for kh in range(K):                                   # static K*K taps
        for kw in range(K):
            t = kh * K + kw
            win = xpad_ref[:, pl.ds(kh, Ho), pl.ds(kw, Wo)]   # (Cin, Ho, Wo)
            xs_ref[pl.ds(t * Cin, Cin), :] = win.reshape(Cin, Ho * Wo)

    # Fused depthwise + pointwise conv == one MXU matmul:
    # (Cout, K*K*Cin) @ (K*K*Cin, Ho*Wo) -> (Cout, Ho*Wo), f32 accumulate.
    y = jnp.dot(wf_ref[...], xs_ref[...], preferred_element_type=jnp.float32)
    out_ref[0] = y.astype(out_ref.dtype)


def separable_conv2d(x_nchw, w_dw, w_pw, *, kernel_size, padding):
    """x_nchw: (N, Cin, H, W); w_dw: (Cin, 1, K, K); w_pw: (Cout, Cin, 1, 1).

    Returns (N, Cout, Ho, Wo) in NCHW with stride=1 semantics (module default).
    """
    # TODO(synk): only stride=1 is implemented (module default); strided output
    # would need strided window extraction in the im2col step.
    # TODO(synk): for large H*W, add spatial tiling with a (K-1)-row halo so the
    # per-step working set fits v7x's 64 MiB VMEM; unnecessary at these shapes.
    N, Cin, H, W = x_nchw.shape
    Cout = w_pw.shape[0]
    K, p = kernel_size, padding
    Hp, Wp = H + 2 * p, W + 2 * p
    Ho, Wo = Hp - K + 1, Wp - K + 1

    # Fused weight: Wf[co, (kh*K+kw)*Cin + c] = w_pw[co,c] * w_dw[c,kh,kw].
    w_dw_ckk = w_dw[:, 0]                                  # (Cin, K, K)
    w_pw_oc = w_pw[:, :, 0, 0]                             # (Cout, Cin)
    wf = jnp.einsum("oc,ckl->oklc", w_pw_oc, w_dw_ckk).reshape(Cout, K * K * Cin)
    wf = wf.astype(x_nchw.dtype)

    kernel = functools.partial(_sepconv_kernel, H=H, W=W, K=K, pad=p)
    out = pl.pallas_call(
        kernel,
        out_shape=jax.ShapeDtypeStruct((N, Cout, Ho * Wo), x_nchw.dtype),
        grid_spec=pltpu.PrefetchScalarGridSpec(
            num_scalar_prefetch=0,
            grid=(N,),
            in_specs=[
                pl.BlockSpec((1, Cin, H, W), lambda n: (n, 0, 0, 0)),
                pl.BlockSpec((Cout, K * K * Cin), lambda n: (0, 0)),
            ],
            out_specs=pl.BlockSpec((1, Cout, Ho * Wo), lambda n: (n, 0, 0)),
            scratch_shapes=[
                pltpu.VMEM((Cin, Hp, Wp), x_nchw.dtype),
                pltpu.VMEM((K * K * Cin, Ho * Wo), x_nchw.dtype),
            ],
        ),
        compiler_params=pltpu.CompilerParams(dimension_semantics=("parallel",)),
    )(x_nchw, wf)

    # Free row-major reshape -> NCHW (no transpose, no extra HBM round trip).
    return out.reshape(N, Cout, Ho, Wo)


def _reference(x_nchw, w_dw, w_pw, *, padding):
    Cin = x_nchw.shape[1]
    y = jax.lax.conv_general_dilated(
        x_nchw, w_dw, window_strides=(1, 1),
        padding=[(padding, padding), (padding, padding)],
        dimension_numbers=("NCHW", "OIHW", "NCHW"),
        feature_group_count=Cin)
    y = jax.lax.conv_general_dilated(
        y, w_pw, window_strides=(1, 1), padding="VALID",
        dimension_numbers=("NCHW", "OIHW", "NCHW"))
    return y


if __name__ == "__main__":
    # SeparableConv2d(in_channels=4, out_channels=8, kernel_size=3, stride=1,
    #                 padding=1, bias=False)
    N, Cin, Cout, H, W = 2, 4, 8, 16, 16
    K, pad = 3, 1

    key = jax.random.PRNGKey(0)
    kx, kd, kp = jax.random.split(key, 3)
    x = jax.random.normal(kx, (N, Cin, H, W), dtype=jnp.float32)
    w_dw = jax.random.normal(kd, (Cin, 1, K, K), dtype=jnp.float32) * 0.1   # depthwise
    w_pw = jax.random.normal(kp, (Cout, Cin, 1, 1), dtype=jnp.float32) * 0.1  # pointwise

    out = separable_conv2d(x, w_dw, w_pw, kernel_size=K, padding=pad)
    out = jax.block_until_ready(out)

    ref = _reference(x, w_dw, w_pw, padding=pad)
    assert out.shape == (N, Cout, H, W)
    assert jnp.allclose(out, ref, atol=1e-4, rtol=1e-4), "mismatch vs lax.conv reference"

    print("KERNEL_OK")
</pallas_src>

<mosaic_0001>
module attributes {stable_mosaic.version = 11 : i64} {
  func.func @_sepconv_kernel(%arg0: i32, %arg1: memref<1x4x16x16xf32, #tpu.memory_space<vmem>>, %arg2: memref<8x36xf32, #tpu.memory_space<vmem>>, %arg3: memref<1x8x256xf32, #tpu.memory_space<vmem>>, %arg4: memref<4x18x18xf32, #tpu.memory_space<vmem>>, %arg5: memref<36x256xf32, #tpu.memory_space<vmem>>) attributes {dimension_semantics = [#tpu.dimension_semantics<parallel>], iteration_bounds = array<i64: 2>, scalar_prefetch = 0 : i64, scratch_operands = 2 : i64, tpu.core_type = #tpu.core_type<tc>, window_params = [{transform_indices = @transform_0, window_bounds = array<i64: 1, 4, 16, 16>}, {pipeline_mode = #tpu.pipeline_mode<synchronous>, transform_indices = @transform_1, window_bounds = array<i64: 8, 36>}, {transform_indices = @transform_2, window_bounds = array<i64: 1, 8, 256>}]} {
    %cst = arith.constant 0.000000e+00 : f32
    %0 = vector.broadcast %cst : f32 to vector<4x18x18xf32>
    %c0 = arith.constant 0 : index
    %c0_0 = arith.constant 0 : index
    %c0_1 = arith.constant 0 : index
    %1 = vector.load %arg4[%c0, %c0_0, %c0_1] : memref<4x18x18xf32, #tpu.memory_space<vmem>>, vector<4x18x18xf32>
    tpu.vector_store %arg4[%c0, %c0_0, %c0_1], %0 {strides = array<i32>} : memref<4x18x18xf32, #tpu.memory_space<vmem>>, vector<4x18x18xf32>,
    %c0_2 = arith.constant 0 : index
    %c0_3 = arith.constant 0 : index
    %c0_4 = arith.constant 0 : index
    %c0_5 = arith.constant 0 : index
    %2 = vector.load %arg1[%c0_2, %c0_3, %c0_4, %c0_5] : memref<1x4x16x16xf32, #tpu.memory_space<vmem>>, vector<1x4x16x16xf32>
    %3 = vector.shape_cast %2 : vector<1x4x16x16xf32> to vector<4x16x16xf32>
    %c0_6 = arith.constant 0 : index
    %c1 = arith.constant 1 : index
    %c1_7 = arith.constant 1 : index
    %4 = vector.load %arg4[%c0_6, %c1, %c1_7] : memref<4x18x18xf32, #tpu.memory_space<vmem>>, vector<4x16x16xf32>
    tpu.vector_store %arg4[%c0_6, %c1, %c1_7], %3 {strides = array<i32>} : memref<4x18x18xf32, #tpu.memory_space<vmem>>, vector<4x16x16xf32>,
    %c0_8 = arith.constant 0 : index
    %c0_9 = arith.constant 0 : index
    %c0_10 = arith.constant 0 : index
    %5 = vector.load %arg4[%c0_8, %c0_9, %c0_10] : memref<4x18x18xf32, #tpu.memory_space<vmem>>, vector<4x16x16xf32>
    %6 = vector.shape_cast %5 : vector<4x16x16xf32> to vector<4x256xf32>
    %c0_11 = arith.constant 0 : index
    %c0_12 = arith.constant 0 : index
    %7 = vector.load %arg5[%c0_11, %c0_12] : memref<36x256xf32, #tpu.memory_space<vmem>>, vector<4x256xf32>
    tpu.vector_store %arg5[%c0_11, %c0_12], %6 {strides = array<i32>} : memref<36x256xf32, #tpu.memory_space<vmem>>, vector<4x256xf32>,
    %c0_13 = arith.constant 0 : index
    %c0_14 = arith.constant 0 : index
    %c1_15 = arith.constant 1 : index
    %8 = vector.load %arg4[%c0_13, %c0_14, %c1_15] : memref<4x18x18xf32, #tpu.memory_space<vmem>>, vector<4x16x16xf32>
    %9 = vector.shape_cast %8 : vector<4x16x16xf32> to vector<4x256xf32>
    %c4 = arith.constant 4 : index
    %c0_16 = arith.constant 0 : index
    %10 = vector.load %arg5[%c4, %c0_16] : memref<36x256xf32, #tpu.memory_space<vmem>>, vector<4x256xf32>
    tpu.vector_store %arg5[%c4, %c0_16], %9 {strides = array<i32>} : memref<36x256xf32, #tpu.memory_space<vmem>>, vector<4x256xf32>,
    %c0_17 = arith.constant 0 : index
    %c0_18 = arith.constant 0 : index
    %c2 = arith.constant 2 : index
    %11 = vector.load %arg4[%c0_17, %c0_18, %c2] : memref<4x18x18xf32, #tpu.memory_space<vmem>>, vector<4x16x16xf32>
    %12 = vector.shape_cast %11 : vector<4x16x16xf32> to vector<4x256xf32>
    %c8 = arith.constant 8 : index
    %c0_19 = arith.constant 0 : index
    %13 = vector.load %arg5[%c8, %c0_19] : memref<36x256xf32, #tpu.memory_space<vmem>>, vector<4x256xf32>
    tpu.vector_store %arg5[%c8, %c0_19], %12 {strides = array<i32>} : memref<36x256xf32, #tpu.memory_space<vmem>>, vector<4x256xf32>,
    %c0_20 = arith.constant 0 : index
    %c1_21 = arith.constant 1 : index
    %c0_22 = arith.constant 0 : index
    %14 = vector.load %arg4[%c0_20, %c1_21, %c0_22] : memref<4x18x18xf32, #tpu.memory_space<vmem>>, vector<4x16x16xf32>
    %15 = vector.shape_cast %14 : vector<4x16x16xf32> to vector<4x256xf32>
    %c12 = arith.constant 12 : index
    %c0_23 = arith.constant 0 : index
    %16 = vector.load %arg5[%c12, %c0_23] : memref<36x256xf32, #tpu.memory_space<vmem>>, vector<4x256xf32>
    tpu.vector_store %arg5[%c12, %c0_23], %15 {strides = array<i32>} : memref<36x256xf32, #tpu.memory_space<vmem>>, vector<4x256xf32>,
    %c0_24 = arith.constant 0 : index
    %c1_25 = arith.constant 1 : index
    %c1_26 = arith.constant 1 : index
    %17 = vector.load %arg4[%c0_24, %c1_25, %c1_26] : memref<4x18x18xf32, #tpu.memory_space<vmem>>, vector<4x16x16xf32>
    %18 = vector.shape_cast %17 : vector<4x16x16xf32> to vector<4x256xf32>
    %c16 = arith.constant 16 : index
    %c0_27 = arith.constant 0 : index
    %19 = vector.load %arg5[%c16, %c0_27] : memref<36x256xf32, #tpu.memory_space<vmem>>, vector<4x256xf32>
    tpu.vector_store %arg5[%c16, %c0_27], %18 {strides = array<i32>} : memref<36x256xf32, #tpu.memory_space<vmem>>, vector<4x256xf32>,
    %c0_28 = arith.constant 0 : index
    %c1_29 = arith.constant 1 : index
    %c2_30 = arith.constant 2 : index
    %20 = vector.load %arg4[%c0_28, %c1_29, %c2_30] : memref<4x18x18xf32, #tpu.memory_space<vmem>>, vector<4x16x16xf32>
    %21 = vector.shape_cast %20 : vector<4x16x16xf32> to vector<4x256xf32>
    %c20 = arith.constant 20 : index
    %c0_31 = arith.constant 0 : index
    %22 = vector.load %arg5[%c20, %c0_31] : memref<36x256xf32, #tpu.memory_space<vmem>>, vector<4x256xf32>
    tpu.vector_store %arg5[%c20, %c0_31], %21 {strides = array<i32>} : memref<36x256xf32, #tpu.memory_space<vmem>>, vector<4x256xf32>,
    %c0_32 = arith.constant 0 : index
    %c2_33 = arith.constant 2 : index
    %c0_34 = arith.constant 0 : index
    %23 = vector.load %arg4[%c0_32, %c2_33, %c0_34] : memref<4x18x18xf32, #tpu.memory_space<vmem>>, vector<4x16x16xf32>
    %24 = vector.shape_cast %23 : vector<4x16x16xf32> to vector<4x256xf32>
    %c24 = arith.constant 24 : index
    %c0_35 = arith.constant 0 : index
    %25 = vector.load %arg5[%c24, %c0_35] : memref<36x256xf32, #tpu.memory_space<vmem>>, vector<4x256xf32>
    tpu.vector_store %arg5[%c24, %c0_35], %24 {strides = array<i32>} : memref<36x256xf32, #tpu.memory_space<vmem>>, vector<4x256xf32>,
    %c0_36 = arith.constant 0 : index
    %c2_37 = arith.constant 2 : index
    %c1_38 = arith.constant 1 : index
    %26 = vector.load %arg4[%c0_36, %c2_37, %c1_38] : memref<4x18x18xf32, #tpu.memory_space<vmem>>, vector<4x16x16xf32>
    %27 = vector.shape_cast %26 : vector<4x16x16xf32> to vector<4x256xf32>
    %c28 = arith.constant 28 : index
    %c0_39 = arith.constant 0 : index
    %28 = vector.load %arg5[%c28, %c0_39] : memref<36x256xf32, #tpu.memory_space<vmem>>, vector<4x256xf32>
    tpu.vector_store %arg5[%c28, %c0_39], %27 {strides = array<i32>} : memref<36x256xf32, #tpu.memory_space<vmem>>, vector<4x256xf32>,
    %c0_40 = arith.constant 0 : index
    %c2_41 = arith.constant 2 : index
    %c2_42 = arith.constant 2 : index
    %29 = vector.load %arg4[%c0_40, %c2_41, %c2_42] : memref<4x18x18xf32, #tpu.memory_space<vmem>>, vector<4x16x16xf32>
    %30 = vector.shape_cast %29 : vector<4x16x16xf32> to vector<4x256xf32>
    %c32 = arith.constant 32 : index
    %c0_43 = arith.constant 0 : index
    %31 = vector.load %arg5[%c32, %c0_43] : memref<36x256xf32, #tpu.memory_space<vmem>>, vector<4x256xf32>
    tpu.vector_store %arg5[%c32, %c0_43], %30 {strides = array<i32>} : memref<36x256xf32, #tpu.memory_space<vmem>>, vector<4x256xf32>,
    %c0_44 = arith.constant 0 : index
    %c0_45 = arith.constant 0 : index
    %32 = vector.load %arg2[%c0_44, %c0_45] : memref<8x36xf32, #tpu.memory_space<vmem>>, vector<8x36xf32>
    %c0_46 = arith.constant 0 : index
    %c0_47 = arith.constant 0 : index
    %33 = vector.load %arg5[%c0_46, %c0_47] : memref<36x256xf32, #tpu.memory_space<vmem>>, vector<36x256xf32>
    %cst_48 = arith.constant dense<0.000000e+00> : vector<8x256xf32>
    %34 = tpu.matmul %32, %33, %cst_48 {dimension_numbers = #tpu.dot_dimension_numbers<[1], [0], [0], [1], [0, 0, 1, 1], [], []>} : vector<8x36xf32>, vector<36x256xf32>, vector<8x256xf32> -> vector<8x256xf32>
    %c0_49 = arith.constant 0 : index
    %c0_50 = arith.constant 0 : index
    %c0_51 = arith.constant 0 : index
    %35 = vector.load %arg3[%c0_49, %c0_50, %c0_51] : memref<1x8x256xf32, #tpu.memory_space<vmem>>, vector<1x8x256xf32>
    %36 = vector.shape_cast %35 : vector<1x8x256xf32> to vector<8x256xf32>
    %37 = vector.shape_cast %34 : vector<8x256xf32> to vector<1x8x256xf32>
    tpu.vector_store %arg3[%c0_49, %c0_50, %c0_51], %37 {strides = array<i32>} : memref<1x8x256xf32, #tpu.memory_space<vmem>>, vector<1x8x256xf32>,
    return
  }
  func.func @transform_0(%arg0: i32) -> (i32, i32, i32, i32) {
    %c0_i32 = arith.constant 0 : i32
    %c0_i32_0 = arith.constant 0 : i32
    %c0_i32_1 = arith.constant 0 : i32
    %c0_i32_2 = arith.constant 0 : i32
    return %arg0, %c0_i32, %c0_i32_0, %c0_i32_1 : i32, i32, i32, i32
  }
  func.func @transform_1(%arg0: i32) -> (i32, i32) {
    %c0_i32 = arith.constant 0 : i32
    %c0_i32_0 = arith.constant 0 : i32
    %c0_i32_1 = arith.constant 0 : i32
    return %c0_i32, %c0_i32_0 : i32, i32
  }
  func.func @transform_2(%arg0: i32) -> (i32, i32, i32) {
    %c0_i32 = arith.constant 0 : i32
    %c0_i32_0 = arith.constant 0 : i32
    %c0_i32_1 = arith.constant 0 : i32
    return %arg0, %c0_i32, %c0_i32_0 : i32, i32, i32
  }
}

</mosaic_0001>

<llo_original>
// kernel: tpu_custom_call.1
$region0: #{tpu_custom_call.1}
  #allocation0 [shape = 'u32[]', space=smem, size = 0x4, offset = 0x4, fixed_abs, tag = 'smem constant byte address 0x4 - core index']
  #allocation1 [shape = 'u32[72,128]{1,0:T(1,128)}', space=vmem, size = 0x9000, scoped, tag = 'internal scratch']
  #allocation2 [shape = 'f32[4,18,18]{2,1,0:T(8,128)}', space=vmem, size = 0xc000, scoped, tag = 'scratch operand']
  #allocation3 [shape = 'f32[36,256]{1,0:T(8,128)}', space=vmem, size = 0xa000, scoped, tag = 'scratch operand']
  %s0 = inlined_call_operand.hbm [shape: f32[2,4,16,16], index: 0, kind: input, shape index: {}]
  %s1 = inlined_call_operand.hbm [shape: f32[8,36], index: 1, kind: input, shape index: {}]
  %s2 = inlined_call_operand.hbm [shape: f32[2,8,256], index: 2, kind: output, shape index: {}]
  %s3 = sld [smem:[#allocation0]]
  $region49: #{tpu_custom_call.1} parent=0
    _
  %s5 = ssub.s32 1, %s3
  %s6 = scalar_select 0, %s5, %s3
  $region1: #{tpu_custom_call.1} parent=0
    #allocation4 [shape = 'u8[65536]{0}', space=vmem, size = 0x10000, scoped, tag = 'input window, operand 0']
    #allocation5 [shape = 's32[2]{0}', space=sflag, size = 0x8, scoped, tag = 'scoped memory for tpu_custom_call.1']
    #allocation6 [shape = 's32[2]{0}', space=sflag, size = 0x8, scoped, tag = 'scoped memory for tpu_custom_call.1']
    #allocation7 [shape = 'u8[4096]{0}', space=vmem, size = 0x1000, scoped, tag = 'input window, operand 1, single buffered']
    #allocation8 [shape = 's32[1]{0}', space=sflag, size = 0x4, scoped, tag = 'scoped memory for tpu_custom_call.1']
    #allocation9 [shape = 'u8[16384]{0}', space=vmem, size = 0x4000, scoped, tag = 'output window, operand 0']
    %7 = vsyncpa [#allocation5], 0
    %s8 = scalar_lea.sflag [#allocation5], 1
    %9 = vsyncpa %s8, 0
    %10 = vsyncpa [#allocation8], 0
    %11 = vsyncpa [#allocation6], 0
    %s12 = scalar_lea.sflag [#allocation6], 1
    %13 = vsyncpa %s12, 0
    loop: start=0, step=1, limit=4
    $region2: #{tpu_custom_call.1} parent=1 // loop_pre_header
      _
    $region3: #{tpu_custom_call.1} parent=1 // loop_header
      %s15 = sphi 0, %s19
      %p16 = scmp.ge.s32.totalorder %s15, 4
      %s25 = sphi 0, %s27
      %s28 = sphi 0, %s25
      %s29 = sphi 0, %s28
      %s45 = sphi 0, %s29
      %s49 = sphi 0, %s49
      %s51 = sphi 0, %s49
      %s52 = sphi 0, %s51
      %s66 = sphi 0, %s52
      %s72 = sphi 0, %s74
      %s75 = sphi 0, %s72
      %s76 = sphi 0, %s75
      %s92 = sphi 0, %s76
    $region4: #{tpu_custom_call.1} parent=1 // loop_header_branch
      %18 = sbr.rel (%p16) target = $region8
    $region5: #{tpu_custom_call.1} parent=1 // loop_body
      %s20 = ssub.s32 %s15, 1
      %s21 = ssub.s32 %s15, 2
      %s22 = sadd.s32 %s15, 1
      %s23 = ssub.s32 %s15, %s22
      %p24 = scmp.eq.s32.totalorder %s23, 0
      %s26 = sadd.s32 %s25, 1
      %s27 = scalar_select %p24, %s25, %s26
      %p30 = pneg %p24
      %p31 = scmp.eq.s32.totalorder %s15, 1
      %p32 = por %p30, %p31
      %p33 = scmp.ne.s32.totalorder %s25, %s28
      %p34 = scmp.eq.s32.totalorder %s15, 0
      %p35 = por %p33, %p34
      %p36 = scmp.ne.s32.totalorder %s25, %s28
      %p37 = scmp.eq.s32.totalorder %s20, 1
      %p38 = por %p36, %p37
      %p39 = scmp.ne.s32.totalorder %s28, %s29
      %p40 = scmp.eq.s32.totalorder %s20, 0
      %p41 = por %p39, %p40
      %p42 = scmp.ne.s32.totalorder %s28, %s29
      %p43 = scmp.eq.s32.totalorder %s21, 1
      %p44 = por %p42, %p43
      %p46 = scmp.ne.s32.totalorder %s29, %s45
      %p47 = scmp.eq.s32.totalorder %s21, 0
      %p48 = por %p46, %p47
      %s50 = sadd.s32 %s49, 1
      %p53 = scmp.eq.s32.totalorder %s15, 1
      %p54 = scmp.ne.s32.totalorder %s49, %s51
      %p55 = scmp.eq.s32.totalorder %s15, 0
      %p56 = por %p54, %p55
      %p57 = scmp.ne.s32.totalorder %s49, %s51
      %p58 = scmp.eq.s32.totalorder %s20, 1
      %p59 = por %p57, %p58
      %p60 = scmp.ne.s32.totalorder %s51, %s52
      %p61 = scmp.eq.s32.totalorder %s20, 0
      %p62 = por %p60, %p61
      %p63 = scmp.ne.s32.totalorder %s51, %s52
      %p64 = scmp.eq.s32.totalorder %s21, 1
      %p65 = por %p63, %p64
      %p67 = scmp.ne.s32.totalorder %s52, %s66
      %p68 = scmp.eq.s32.totalorder %s21, 0
      %p69 = por %p67, %p68
      %s70 = ssub.s32 %s15, %s22
      %p71 = scmp.eq.s32.totalorder %s70, 0
      %s73 = sadd.s32 %s72, 1
      %s74 = scalar_select %p71, %s72, %s73
      %p77 = pneg %p71
      %p78 = scmp.eq.s32.totalorder %s15, 1
      %p79 = por %p77, %p78
      %p80 = scmp.ne.s32.totalorder %s72, %s75
      %p81 = scmp.eq.s32.totalorder %s15, 0
      %p82 = por %p80, %p81
      %p83 = scmp.ne.s32.totalorder %s72, %s75
      %p84 = scmp.eq.s32.totalorder %s20, 1
      %p85 = por %p83, %p84
      %p86 = scmp.ne.s32.totalorder %s75, %s76
      %p87 = scmp.eq.s32.totalorder %s20, 0
      %p88 = por %p86, %p87
      %p89 = scmp.ne.s32.totalorder %s75, %s76
      %p90 = scmp.eq.s32.totalorder %s21, 1
      %p91 = por %p89, %p90
      %p93 = scmp.ne.s32.totalorder %s76, %s92
      %p94 = scmp.eq.s32.totalorder %s21, 0
      %p95 = por %p93, %p94
      %p96 = scmp.le.s32.totalorder 1, %s15
      %p97 = scmp.lt.s32.totalorder %s15, 3
      %p98 = pnand %p96, %p97
      %p99 = pneg %p98
      // Predicated region
      $region9: #{tpu_custom_call.1} parent=5 // pred_check
        _
      $region10: #{tpu_custom_call.1} parent=5 // pred_check_branch
        %101 = sbr.rel (%p98) target = $region12
      $region11: #{tpu_custom_call.1} parent=5 // pred_region
        %s102 = ssub.s32 %s15, 1
        // Predicated region
        $region13: #{tpu_custom_call.1} parent=11 // pred_check
          %p103 = pneg %p62
        $region14: #{tpu_custom_call.1} parent=11 // pred_check_branch
          %105 = sbr.rel (%p103) target = $region16
        $region15: #{tpu_custom_call.1} parent=11 // pred_region
          %107 = vsyncadd [#allocation8], 0
          %s109 = sshll.u32 %s1, 4
          %s110 = int_to_ptr.hbm [resolvable:$true] %s109
          %s111 = sshll.u32 [#allocation7], 4
          %s112 = int_to_ptr.vmem [resolvable:$true] %s111
          %114 = dma.hbm_to_vmem [thread:$0]  %s110, 128, %s112, [#allocation8]
        $region16: #{tpu_custom_call.1} parent=11 // pred_fallthru
          _
      $region12: #{tpu_custom_call.1} parent=5 // pred_fallthru
        _
      %p115 = scmp.lt.s32.totalorder %s15, 2
      // Predicated region
      $region17: #{tpu_custom_call.1} parent=5 // pred_check
        %p116 = pneg %p115
      $region18: #{tpu_custom_call.1} parent=5 // pred_check_branch
        %118 = sbr.rel (%p116) target = $region20
      $region19: #{tpu_custom_call.1} parent=5 // pred_region
        // Predicated region
        $region21: #{tpu_custom_call.1} parent=19 // pred_check
          %p119 = pneg %p35
        $region22: #{tpu_custom_call.1} parent=19 // pred_check_branch
          %121 = sbr.rel (%p119) target = $region24
        $region23: #{tpu_custom_call.1} parent=19 // pred_region
          %s122 = sand.u32 %s25, 1
          %s123 = scalar_lea.sflag [#allocation5], %s122
          %s124 = sand.u32 %s25, 1
          %s125 = smul.addr %s124, 64
          %s126 = scalar_lea.vmem [#allocation4], %s125
          %128 = vsyncadd %s123, 0
          %s129 = smul.addr %s15, 8
          %s130 = smul.addr %s129, 8
          %s131 = scalar_lea.hbm %s0, %s130
          %s132 = sshll.u32 %s131, 4
          %s133 = int_to_ptr.hbm [resolvable:$true] %s132
          %s134 = sshll.u32 %s126, 4
          %s135 = int_to_ptr.vmem [resolvable:$true] %s134
          %140 = dma.hbm_to_vmem [thread:$0]  %s133, 1024, %s135, %s123, 128, 128, 8
        $region24: #{tpu_custom_call.1} parent=19 // pred_fallthru
          _
      $region20: #{tpu_custom_call.1} parent=5 // pred_fallthru
        _
      %p141 = scmp.le.s32.totalorder 1, %s15
      %p142 = scmp.lt.s32.totalorder %s15, 3
      %p143 = pnand %p141, %p142
      %p144 = pneg %p143
      // Predicated region
      $region25: #{tpu_custom_call.1} parent=5 // pred_check
        _
      $region26: #{tpu_custom_call.1} parent=5 // pred_check_branch
        %146 = sbr.rel (%p143) target = $region28
      $region27: #{tpu_custom_call.1} parent=5 // pred_region
        %s147 = ssub.s32 %s15, 1
        %s148 = sand.u32 %s28, 1
        %s149 = scalar_lea.sflag [#allocation5], %s148
        %s150 = sand.u32 %s28, 1
        %s151 = smul.addr %s150, 64
        %s152 = scalar_lea.vmem [#allocation4], %s151
        // Predicated region
        $region29: #{tpu_custom_call.1} parent=27 // pred_check
          %p153 = pneg %p41
        $region30: #{tpu_custom_call.1} parent=27 // pred_check_branch
          %155 = sbr.rel (%p153) target = $region32
        $region31: #{tpu_custom_call.1} parent=27 // pred_region
          %157 = dma.done %s149, 1024
        $region32: #{tpu_custom_call.1} parent=27 // pred_fallthru
          _
        // Predicated region
        $region33: #{tpu_custom_call.1} parent=27 // pred_check
          %p158 = pneg %p62
        $region34: #{tpu_custom_call.1} parent=27 // pred_check_branch
          %160 = sbr.rel (%p158) target = $region36
        $region35: #{tpu_custom_call.1} parent=27 // pred_region
          %162 = dma.done [#allocation8], 128
        $region36: #{tpu_custom_call.1} parent=27 // pred_fallthru
          _
        %s163 = sand.u32 %s28, 1
        %s164 = scalar_lea.sflag [#allocation5], %s163
        %s165 = sand.u32 %s28, 1
        %s166 = smul.addr %s165, 64
        %s167 = scalar_lea.vmem [#allocation4], %s166
        %p168 = pneg %p41
        %p169 = pneg %p38
        %p170 = pneg %p62
        %p171 = pneg %p59
        %p172 = pneg %p88
        %p173 = pneg %p85
        %s174 = sand.u32 %s75, 1
        %s175 = scalar_lea.sflag [#allocation6], %s174
        %s176 = sand.u32 %s75, 1
        %s177 = smul.addr %s176, 16
        %s178 = scalar_lea.vmem [#allocation9], %s177
        %vm179 = vcmask 146432
        %180 = vst.msk [vmem:[#allocation2] sm:$0xff] %vm179, 0.0
        %181 = vst.msk [vmem:[#allocation2 + $0x8] sm:$0xff] %vm179, 0.0
        %vm182 = vcmask 140288
        %183 = vst.msk [vmem:[#allocation2 + $0x10] sm:$0x3] %vm182, 0.0
        %184 = vst.msk [vmem:[#allocation2 + $0x18] sm:$0xff] %vm179, 0.0
        %185 = vst.msk [vmem:[#allocation2 + $0x20] sm:$0xff] %vm179, 0.0
        %186 = vst.msk [vmem:[#allocation2 + $0x28] sm:$0x3] %vm182, 0.0
        %187 = vst.msk [vmem:[#allocation2 + $0x30] sm:$0xff] %vm179, 0.0
        %188 = vst.msk [vmem:[#allocation2 + $0x38] sm:$0xff] %vm179, 0.0
        %189 = vst.msk [vmem:[#allocation2 + $0x40] sm:$0x3] %vm182, 0.0
        %190 = vst.msk [vmem:[#allocation2 + $0x48] sm:$0xff] %vm179, 0.0
        %191 = vst.msk [vmem:[#allocation2 + $0x50] sm:$0xff] %vm179, 0.0
        %192 = vst.msk [vmem:[#allocation2 + $0x58] sm:$0x3] %vm182, 0.0
        %v193 = vld [vmem:[%s152] sm:$0xff]
        %v194 = vld [vmem:[%s152 + $0x8] sm:$0xff]
        %v195 = vld [vmem:[%s152 + $0x10] sm:$0xff]
        %v196 = vld [vmem:[%s152 + $0x18] sm:$0xff]
        %v197 = vld [vmem:[%s152 + $0x20] sm:$0xff]
        %v198 = vld [vmem:[%s152 + $0x28] sm:$0xff]
        %v199 = vld [vmem:[%s152 + $0x30] sm:$0xff]
        %v200 = vld [vmem:[%s152 + $0x38] sm:$0xff]
        %209 = vrot.lane.b32.xlu0 %v193, 1
        %v210 = vpop.permute.xlu0 %209
        %211 = vrot.lane.b32.xlu0 %v194, 1
        %v212 = vpop.permute.xlu0 %211
        %213 = vrot.lane.b32.xlu0 %v195, 1
        %v214 = vpop.permute.xlu0 %213
        %215 = vrot.lane.b32.xlu0 %v196, 1
        %v216 = vpop.permute.xlu0 %215
        %217 = vrot.lane.b32.xlu0 %v197, 1
        %v218 = vpop.permute.xlu0 %217
        %219 = vrot.lane.b32.xlu0 %v198, 1
        %v220 = vpop.permute.xlu0 %219
        %221 = vrot.lane.b32.xlu0 %v199, 1
        %v222 = vpop.permute.xlu0 %221
        %223 = vrot.lane.b32.xlu0 %v200, 1
        %v224 = vpop.permute.xlu0 %223
        %vm233 = vcmask 138248
        %234 = vst.msk [vmem:[#allocation2 + $0x1] sm:$0xff] %vm233, %v210
        %235 = vst.msk [vmem:[#allocation2 + $0x9] sm:$0xff] %vm233, %v212
        %236 = vst.msk [vmem:[#allocation2 + $0x19] sm:$0xff] %vm233, %v214
        %237 = vst.msk [vmem:[#allocation2 + $0x21] sm:$0xff] %vm233, %v216
        %238 = vst.msk [vmem:[#allocation2 + $0x31] sm:$0xff] %vm233, %v218
        %239 = vst.msk [vmem:[#allocation2 + $0x39] sm:$0xff] %vm233, %v220
        %240 = vst.msk [vmem:[#allocation2 + $0x49] sm:$0xff] %vm233, %v222
        %241 = vst.msk [vmem:[#allocation2 + $0x51] sm:$0xff] %vm233, %v224
        %v242 = vld [vmem:[#allocation2] sm:$0xff]
        %v243 = vld [vmem:[#allocation2 + $0x8] sm:$0xff]
        %v244 = vld [vmem:[#allocation2 + $0x18] sm:$0xff]
        %v245 = vld [vmem:[#allocation2 + $0x20] sm:$0xff]
        %v246 = vld [vmem:[#allocation2 + $0x30] sm:$0xff]
        %v247 = vld [vmem:[#allocation2 + $0x38] sm:$0xff]
        %v248 = vld [vmem:[#allocation2 + $0x48] sm:$0xff]
        %v249 = vld [vmem:[#allocation2 + $0x50] sm:$0xff]
        %v250 = vrot.slane %v246, 4
        %vm251 = vcmask 1047556
        %v252 = vsel %vm251, %v250, %v242
        %v253 = vrot.slane %v242, 4
        %v254 = vsel %vm251, %v246, %v253
        %v256 = vunpack.c.l.s4 1983009808
        %v257 = vunpack.c.0.s8 %v256
        %v258 = vperm.slane %v252, %v257
        %v260 = vunpack.c.l.s4 1983009808
        %v261 = vunpack.c.0.s8 %v260
        %v262 = vperm.slane %v254, %v261
        %v263 = vrot.slane %v248, 4
        %v264 = vsel %vm251, %v263, %v244
        %v265 = vrot.slane %v244, 4
        %v266 = vsel %vm251, %v248, %v265
        %v268 = vunpack.c.l.s4 1983009808
        %v269 = vunpack.c.0.s8 %v268
        %v270 = vperm.slane %v264, %v269
        %v272 = vunpack.c.l.s4 1983009808
        %v273 = vunpack.c.0.s8 %v272
        %v274 = vperm.slane %v266, %v273
        %v275 = vrot.slane %v270, 4
        %v276 = vsel %vm251, %v275, %v258
        %v277 = vrot.slane %v258, 4
        %v278 = vsel %vm251, %v270, %v277
        %v280 = vunpack.c.l.s4 1934713408
        %v281 = vunpack.c.0.s8 %v280
        %v282 = vperm.slane %v276, %v281
        %v284 = vunpack.c.l.s4 1934713408
        %v285 = vunpack.c.0.s8 %v284
        %v286 = vperm.slane %v278, %v285
        %v287 = vrot.slane %v274, 4
        %v288 = vsel %vm251, %v287, %v262
        %v289 = vrot.slane %v262, 4
        %v290 = vsel %vm251, %v274, %v289
        %v292 = vunpack.c.l.s4 1934713408
        %v293 = vunpack.c.0.s8 %v292
        %v294 = vperm.slane %v288, %v293
        %v296 = vunpack.c.l.s4 1934713408
        %v297 = vunpack.c.0.s8 %v296
        %v298 = vperm.slane %v290, %v297
        %v299 = vrot.slane %v282, 4
        %v300 = vsel %vm251, 0.0, %v299
        %v301 = vrot.slane %v286, 4
        %v302 = vsel %vm251, 0.0, %v301
        %v303 = vrot.slane %v294, 4
        %v304 = vsel %vm251, 0.0, %v303
        %v305 = vrot.slane %v298, 4
        %v306 = vsel %vm251, 0.0, %v305
        %v307 = vrot.slane %v247, 4
        %v308 = vsel %vm251, %v307, %v243
        %v309 = vrot.slane %v243, 4
        %v310 = vsel %vm251, %v247, %v309
        %v312 = vunpack.c.l.s4 1983009808
        %v313 = vunpack.c.0.s8 %v312
        %v314 = vperm.slane %v308, %v313
        %v316 = vunpack.c.l.s4 1983009808
        %v317 = vunpack.c.0.s8 %v316
        %v318 = vperm.slane %v310, %v317
        %v319 = vrot.slane %v249, 4
        %v320 = vsel %vm251, %v319, %v245
        %v321 = vrot.slane %v245, 4
        %v322 = vsel %vm251, %v249, %v321
        %v324 = vunpack.c.l.s4 1983009808
        %v325 = vunpack.c.0.s8 %v324
        %v326 = vperm.slane %v320, %v325
        %v328 = vunpack.c.l.s4 1983009808
        %v329 = vunpack.c.0.s8 %v328
        %v330 = vperm.slane %v322, %v329
        %v331 = vrot.slane %v326, 4
        %v332 = vsel %vm251, %v331, %v314
        %v333 = vrot.slane %v314, 4
        %v334 = vsel %vm251, %v326, %v333
        %v336 = vunpack.c.l.s4 1934713408
        %v337 = vunpack.c.0.s8 %v336
        %v338 = vperm.slane %v332, %v337
        %v340 = vunpack.c.l.s4 1934713408
        %v341 = vunpack.c.0.s8 %v340
        %v342 = vperm.slane %v334, %v341
        %v343 = vrot.slane %v330, 4
        %v344 = vsel %vm251, %v343, %v318
        %v345 = vrot.slane %v318, 4
        %v346 = vsel %vm251, %v330, %v345
        %v348 = vunpack.c.l.s4 1934713408
        %v349 = vunpack.c.0.s8 %v348
        %v350 = vperm.slane %v344, %v349
        %v352 = vunpack.c.l.s4 1934713408
        %v353 = vunpack.c.0.s8 %v352
        %v354 = vperm.slane %v346, %v353
        %v355 = vrot.slane %v338, 4
        %v356 = vsel %vm251, 0.0, %v355
        %v357 = vrot.slane %v342, 4
        %v358 = vsel %vm251, 0.0, %v357
        %v359 = vrot.slane %v350, 4
        %v360 = vsel %vm251, 0.0, %v359
        %v361 = vrot.slane %v354, 4
        %v362 = vsel %vm251, 0.0, %v361
        %364 = vrot.lane.b32.xlu0 %v300, 16
        %v365 = vpop.permute.xlu0 %364
        %368 = vrot.lane.b32.xlu0 %v286, 32
        %v369 = vpop.permute.xlu0 %368
        %372 = vrot.lane.b32.xlu0 %v302, 48
        %v373 = vpop.permute.xlu0 %372
        %376 = vrot.lane.b32.xlu0 %v294, 64
        %v377 = vpop.permute.xlu0 %376
        %380 = vrot.lane.b32.xlu0 %v304, 80
        %v381 = vpop.permute.xlu0 %380
        %384 = vrot.lane.b32.xlu0 %v298, 96
        %v385 = vpop.permute.xlu0 %384
        %388 = vrot.lane.b32.xlu0 %v306, 112
        %v389 = vpop.permute.xlu0 %388
        %392 = vrot.lane.b32.xlu0 %v356, 16
        %v393 = vpop.permute.xlu0 %392
        %396 = vrot.lane.b32.xlu0 %v342, 32
        %v397 = vpop.permute.xlu0 %396
        %400 = vrot.lane.b32.xlu0 %v358, 48
        %v401 = vpop.permute.xlu0 %400
        %404 = vrot.lane.b32.xlu0 %v350, 64
        %v405 = vpop.permute.xlu0 %404
        %408 = vrot.lane.b32.xlu0 %v360, 80
        %v409 = vpop.permute.xlu0 %408
        %412 = vrot.lane.b32.xlu0 %v354, 96
        %v413 = vpop.permute.xlu0 %412
        %416 = vrot.lane.b32.xlu0 %v362, 112
        %v417 = vpop.permute.xlu0 %416
        %vm419 = vcmask 130048
        %v420 = vsel %vm419, %v282, %v365
        %vm421 = vcmask 261120
        %v422 = vsel %vm421, %v420, %v369
        %vm423 = vcmask 392192
        %v424 = vsel %vm423, %v422, %v373
        %vm425 = vcmask 523264
        %v426 = vsel %vm425, %v424, %v377
        %vm427 = vcmask 654336
        %v428 = vsel %vm427, %v426, %v381
        %vm429 = vcmask 785408
        %v430 = vsel %vm429, %v428, %v385
        %vm431 = vcmask 916480
        %v432 = vsel %vm431, %v430, %v389
        %v433 = vsel %vm419, %v338, %v393
        %v434 = vsel %vm421, %v433, %v397
        %v435 = vsel %vm423, %v434, %v401
        %v436 = vsel %vm425, %v435, %v405
        %v437 = vsel %vm427, %v436, %v409
        %v438 = vsel %vm429, %v437, %v413
        %v439 = vsel %vm431, %v438, %v417
        %440 = vst [vmem:[#allocation3] sm:$0xf] %v432
        %441 = vst [vmem:[#allocation3 + $0x8] sm:$0xf] %v439
        %v442 = vld [vmem:[#allocation2] sm:$0xff]
        %v443 = vld [vmem:[#allocation2 + $0x8] sm:$0xff]
        %v444 = vld [vmem:[#allocation2 + $0x18] sm:$0xff]
        %v445 = vld [vmem:[#allocation2 + $0x20] sm:$0xff]
        %v446 = vld [vmem:[#allocation2 + $0x30] sm:$0xff]
        %v447 = vld [vmem:[#allocation2 + $0x38] sm:$0xff]
        %v448 = vld [vmem:[#allocation2 + $0x48] sm:$0xff]
        %v449 = vld [vmem:[#allocation2 + $0x50] sm:$0xff]
        %458 = vrot.lane.b32.xlu0 %v442, 127
        %v459 = vpop.permute.xlu0 %458
        %460 = vrot.lane.b32.xlu0 %v443, 127
        %v461 = vpop.permute.xlu0 %460
        %462 = vrot.lane.b32.xlu0 %v444, 127
        %v463 = vpop.permute.xlu0 %462
        %464 = vrot.lane.b32.xlu0 %v445, 127
        %v465 = vpop.permute.xlu0 %464
        %466 = vrot.lane.b32.xlu0 %v446, 127
        %v467 = vpop.permute.xlu0 %466
        %468 = vrot.lane.b32.xlu0 %v447, 127
        %v469 = vpop.permute.xlu0 %468
        %470 = vrot.lane.b32.xlu0 %v448, 127
        %v471 = vpop.permute.xlu0 %470
        %472 = vrot.lane.b32.xlu0 %v449, 127
        %v473 = vpop.permute.xlu0 %472
        %v482 = vrot.slane %v467, 4
        %v483 = vsel %vm251, %v482, %v459
        %v484 = vrot.slane %v459, 4
        %v485 = vsel %vm251, %v467, %v484
        %v487 = vunpack.c.l.s4 1983009808
        %v488 = vunpack.c.0.s8 %v487
        %v489 = vperm.slane %v483, %v488
        %v491 = vunpack.c.l.s4 1983009808
        %v492 = vunpack.c.0.s8 %v491
        %v493 = vperm.slane %v485, %v492
        %v494 = vrot.slane %v471, 4
        %v495 = vsel %vm251, %v494, %v463
        %v496 = vrot.slane %v463, 4
        %v497 = vsel %vm251, %v471, %v496
        %v499 = vunpack.c.l.s4 1983009808
        %v500 = vunpack.c.0.s8 %v499
        %v501 = vperm.slane %v495, %v500
        %v503 = vunpack.c.l.s4 1983009808
        %v504 = vunpack.c.0.s8 %v503
        %v505 = vperm.slane %v497, %v504
        %v506 = vrot.slane %v501, 4
        %v507 = vsel %vm251, %v506, %v489
        %v508 = vrot.slane %v489, 4
        %v509 = vsel %vm251, %v501, %v508
        %v511 = vunpack.c.l.s4 1934713408
        %v512 = vunpack.c.0.s8 %v511
        %v513 = vperm.slane %v507, %v512
        %v515 = vunpack.c.l.s4 1934713408
        %v516 = vunpack.c.0.s8 %v515
        %v517 = vperm.slane %v509, %v516
        %v518 = vrot.slane %v505, 4
        %v519 = vsel %vm251, %v518, %v493
        %v520 = vrot.slane %v493, 4
        %v521 = vsel %vm251, %v505, %v520
        %v523 = vunpack.c.l.s4 1934713408
        %v524 = vunpack.c.0.s8 %v523
        %v525 = vperm.slane %v519, %v524
        %v527 = vunpack.c.l.s4 1934713408
        %v528 = vunpack.c.0.s8 %v527
        %v529 = vperm.slane %v521, %v528
        %v530 = vrot.slane %v513, 4
        %v531 = vsel %vm251, 0.0, %v530
        %v532 = vrot.slane %v517, 4
        %v533 = vsel %vm251, 0.0, %v532
        %v534 = vrot.slane %v525, 4
        %v535 = vsel %vm251, 0.0, %v534
        %v536 = vrot.slane %v529, 4
        %v537 = vsel %vm251, 0.0, %v536
        %v538 = vrot.slane %v469, 4
        %v539 = vsel %vm251, %v538, %v461
        %v540 = vrot.slane %v461, 4
        %v541 = vsel %vm251, %v469, %v540
        %v543 = vunpack.c.l.s4 1983009808
        %v544 = vunpack.c.0.s8 %v543
        %v545 = vperm.slane %v539, %v544
        %v547 = vunpack.c.l.s4 1983009808
        %v548 = vunpack.c.0.s8 %v547
        %v549 = vperm.slane %v541, %v548
        %v550 = vrot.slane %v473, 4
        %v551 = vsel %vm251, %v550, %v465
        %v552 = vrot.slane %v465, 4
        %v553 = vsel %vm251, %v473, %v552
        %v555 = vunpack.c.l.s4 1983009808
        %v556 = vunpack.c.0.s8 %v555
        %v557 = vperm.slane %v551, %v556
        %v559 = vunpack.c.l.s4 1983009808
        %v560 = vunpack.c.0.s8 %v559
        %v561 = vperm.slane %v553, %v560
        %v562 = vrot.slane %v557, 4
        %v563 = vsel %vm251, %v562, %v545
        %v564 = vrot.slane %v545, 4
        %v565 = vsel %vm251, %v557, %v564
        %v567 = vunpack.c.l.s4 1934713408
        %v568 = vunpack.c.0.s8 %v567
        %v569 = vperm.slane %v563, %v568
        %v571 = vunpack.c.l.s4 1934713408
        %v572 = vunpack.c.0.s8 %v571
        %v573 = vperm.slane %v565, %v572
        %v574 = vrot.slane %v561, 4
        %v575 = vsel %vm251, %v574, %v549
        %v576 = vrot.slane %v549, 4
        %v577 = vsel %vm251, %v561, %v576
        %v579 = vunpack.c.l.s4 1934713408
        %v580 = vunpack.c.0.s8 %v579
        %v581 = vperm.slane %v575, %v580
        %v583 = vunpack.c.l.s4 1934713408
        %v584 = vunpack.c.0.s8 %v583
        %v585 = vperm.slane %v577, %v584
        %v586 = vrot.slane %v569, 4
        %v587 = vsel %vm251, 0.0, %v586
        %v588 = vrot.slane %v573, 4
        %v589 = vsel %vm251, 0.0, %v588
        %v590 = vrot.slane %v581, 4
        %v591 = vsel %vm251, 0.0, %v590
        %v592 = vrot.slane %v585, 4
        %v593 = vsel %vm251, 0.0, %v592
        %595 = vrot.lane.b32.xlu0 %v531, 16
        %v596 = vpop.permute.xlu0 %595
        %599 = vrot.lane.b32.xlu0 %v517, 32
        %v600 = vpop.permute.xlu0 %599
        %603 = vrot.lane.b32.xlu0 %v533, 48
        %v604 = vpop.permute.xlu0 %603
        %607 = vrot.lane.b32.xlu0 %v525, 64
        %v608 = vpop.permute.xlu0 %607
        %611 = vrot.lane.b32.xlu0 %v535, 80
        %v612 = vpop.permute.xlu0 %611
        %615 = vrot.lane.b32.xlu0 %v529, 96
        %v616 = vpop.permute.xlu0 %615
        %619 = vrot.lane.b32.xlu0 %v537, 112
        %v620 = vpop.permute.xlu0 %619
        %623 = vrot.lane.b32.xlu0 %v587, 16
        %v624 = vpop.permute.xlu0 %623
        %627 = vrot.lane.b32.xlu0 %v573, 32
        %v628 = vpop.permute.xlu0 %627
        %631 = vrot.lane.b32.xlu0 %v589, 48
        %v632 = vpop.permute.xlu0 %631
        %635 = vrot.lane.b32.xlu0 %v581, 64
        %v636 = vpop.permute.xlu0 %635
        %639 = vrot.lane.b32.xlu0 %v591, 80
        %v640 = vpop.permute.xlu0 %639
        %643 = vrot.lane.b32.xlu0 %v585, 96
        %v644 = vpop.permute.xlu0 %643
        %647 = vrot.lane.b32.xlu0 %v593, 112
        %v648 = vpop.permute.xlu0 %647
        %v650 = vsel %vm419, %v513, %v596
        %v651 = vsel %vm421, %v650, %v600
        %v652 = vsel %vm423, %v651, %v604
        %v653 = vsel %vm425, %v652, %v608
        %v654 = vsel %vm427, %v653, %v612
        %v655 = vsel %vm429, %v654, %v616
        %v656 = vsel %vm431, %v655, %v620
        %v657 = vsel %vm419, %v569, %v624
        %v658 = vsel %vm421, %v657, %v628
        %v659 = vsel %vm423, %v658, %v632
        %v660 = vsel %vm425, %v659, %v636
        %v661 = vsel %vm427, %v660, %v640
        %v662 = vsel %vm429, %v661, %v644
        %v663 = vsel %vm431, %v662, %v648
        %v666 = vrot.slane %v656, 4
        %v667 = vrot.slane %v663, 4
        %670 = vst [vmem:[#allocation3] sm:$0xf0] %v666
        %671 = vst [vmem:[#allocation3 + $0x8] sm:$0xf0] %v667
        %v672 = vld [vmem:[#allocation2] sm:$0xff]
        %v673 = vld [vmem:[#allocation2 + $0x8] sm:$0xff]
        %v674 = vld [vmem:[#allocation2 + $0x18] sm:$0xff]
        %v675 = vld [vmem:[#allocation2 + $0x20] sm:$0xff]
        %v676 = vld [vmem:[#allocation2 + $0x30] sm:$0xff]
        %v677 = vld [vmem:[#allocation2 + $0x38] sm:$0xff]
        %v678 = vld [vmem:[#allocation2 + $0x48] sm:$0xff]
        %v679 = vld [vmem:[#allocation2 + $0x50] sm:$0xff]
        %688 = vrot.lane.b32.xlu0 %v672, 126
        %v689 = vpop.permute.xlu0 %688
        %690 = vrot.lane.b32.xlu0 %v673, 126
        %v691 = vpop.permute.xlu0 %690
        %692 = vrot.lane.b32.xlu0 %v674, 126
        %v693 = vpop.permute.xlu0 %692
        %694 = vrot.lane.b32.xlu0 %v675, 126
        %v695 = vpop.permute.xlu0 %694
        %696 = vrot.lane.b32.xlu0 %v676, 126
        %v697 = vpop.permute.xlu0 %696
        %698 = vrot.lane.b32.xlu0 %v677, 126
        %v699 = vpop.permute.xlu0 %698
        %700 = vrot.lane.b32.xlu0 %v678, 126
        %v701 = vpop.permute.xlu0 %700
        %702 = vrot.lane.b32.xlu0 %v679, 126
        %v703 = vpop.permute.xlu0 %702
        %v712 = vrot.slane %v697, 4
        %v713 = vsel %vm251, %v712, %v689
        %v714 = vrot.slane %v689, 4
        %v715 = vsel %vm251, %v697, %v714
        %v717 = vunpack.c.l.s4 1983009808
        %v718 = vunpack.c.0.s8 %v717
        %v719 = vperm.slane %v713, %v718
        %v721 = vunpack.c.l.s4 1983009808
        %v722 = vunpack.c.0.s8 %v721
        %v723 = vperm.slane %v715, %v722
        %v724 = vrot.slane %v701, 4
        %v725 = vsel %vm251, %v724, %v693
        %v726 = vrot.slane %v693, 4
        %v727 = vsel %vm251, %v701, %v726
        %v729 = vunpack.c.l.s4 1983009808
        %v730 = vunpack.c.0.s8 %v729
        %v731 = vperm.slane %v725, %v730
        %v733 = vunpack.c.l.s4 1983009808
        %v734 = vunpack.c.0.s8 %v733
        %v735 = vperm.slane %v727, %v734
        %v736 = vrot.slane %v731, 4
        %v737 = vsel %vm251, %v736, %v719
        %v738 = vrot.slane %v719, 4
        %v739 = vsel %vm251, %v731, %v738
        %v741 = vunpack.c.l.s4 1934713408
        %v742 = vunpack.c.0.s8 %v741
        %v743 = vperm.slane %v737, %v742
        %v745 = vunpack.c.l.s4 1934713408
        %v746 = vunpack.c.0.s8 %v745
        %v747 = vperm.slane %v739, %v746
        %v748 = vrot.slane %v735, 4
        %v749 = vsel %vm251, %v748, %v723
        %v750 = vrot.slane %v723, 4
        %v751 = vsel %vm251, %v735, %v750
        %v753 = vunpack.c.l.s4 1934713408
        %v754 = vunpack.c.0.s8 %v753
        %v755 = vperm.slane %v749, %v754
        %v757 = vunpack.c.l.s4 1934713408
        %v758 = vunpack.c.0.s8 %v757
        %v759 = vperm.slane %v751, %v758
        %v760 = vrot.slane %v743, 4
        %v761 = vsel %vm251, 0.0, %v760
        %v762 = vrot.slane %v747, 4
        %v763 = vsel %vm251, 0.0, %v762
        %v764 = vrot.slane %v755, 4
        %v765 = vsel %vm251, 0.0, %v764
        %v766 = vrot.slane %v759, 4
        %v767 = vsel %vm251, 0.0, %v766
        %v768 = vrot.slane %v699, 4
        %v769 = vsel %vm251, %v768, %v691
        %v770 = vrot.slane %v691, 4
        %v771 = vsel %vm251, %v699, %v770
        %v773 = vunpack.c.l.s4 1983009808
        %v774 = vunpack.c.0.s8 %v773
        %v775 = vperm.slane %v769, %v774
        %v777 = vunpack.c.l.s4 1983009808
        %v778 = vunpack.c.0.s8 %v777
        %v779 = vperm.slane %v771, %v778
        %v780 = vrot.slane %v703, 4
        %v781 = vsel %vm251, %v780, %v695
        %v782 = vrot.slane %v695, 4
        %v783 = vsel %vm251, %v703, %v782
        %v785 = vunpack.c.l.s4 1983009808
        %v786 = vunpack.c.0.s8 %v785
        %v787 = vperm.slane %v781, %v786
        %v789 = vunpack.c.l.s4 1983009808
        %v790 = vunpack.c.0.s8 %v789
        %v791 = vperm.slane %v783, %v790
        %v792 = vrot.slane %v787, 4
        %v793 = vsel %vm251, %v792, %v775
        %v794 = vrot.slane %v775, 4
        %v795 = vsel %vm251, %v787, %v794
        %v797 = vunpack.c.l.s4 1934713408
        %v798 = vunpack.c.0.s8 %v797
        %v799 = vperm.slane %v793, %v798
        %v801 = vunpack.c.l.s4 1934713408
        %v802 = vunpack.c.0.s8 %v801
        %v803 = vperm.slane %v795, %v802
        %v804 = vrot.slane %v791, 4
        %v805 = vsel %vm251, %v804, %v779
        %v806 = vrot.slane %v779, 4
        %v807 = vsel %vm251, %v791, %v806
        %v809 = vunpack.c.l.s4 1934713408
        %v810 = vunpack.c.0.s8 %v809
        %v811 = vperm.slane %v805, %v810
        %v813 = vunpack.c.l.s4 1934713408
        %v814 = vunpack.c.0.s8 %v813
        %v815 = vperm.slane %v807, %v814
        %v816 = vrot.slane %v799, 4
        %v817 = vsel %vm251, 0.0, %v816
        %v818 = vrot.slane %v803, 4
        %v819 = vsel %vm251, 0.0, %v818
        %v820 = vrot.slane %v811, 4
        %v821 = vsel %vm251, 0.0, %v820
        %v822 = vrot.slane %v815, 4
        %v823 = vsel %vm251, 0.0, %v822
        %825 = vrot.lane.b32.xlu0 %v761, 16
        %v826 = vpop.permute.xlu0 %825
        %829 = vrot.lane.b32.xlu0 %v747, 32
        %v830 = vpop.permute.xlu0 %829
        %833 = vrot.lane.b32.xlu0 %v763, 48
        %v834 = vpop.permute.xlu0 %833
        %837 = vrot.lane.b32.xlu0 %v755, 64
        %v838 = vpop.permute.xlu0 %837
        %841 = vrot.lane.b32.xlu0 %v765, 80
        %v842 = vpop.permute.xlu0 %841
        %845 = vrot.lane.b32.xlu0 %v759, 96
        %v846 = vpop.permute.xlu0 %845
        %849 = vrot.lane.b32.xlu0 %v767, 112
        %v850 = vpop.permute.xlu0 %849
        %853 = vrot.lane.b32.xlu0 %v817, 16
        %v854 = vpop.permute.xlu0 %853
        %857 = vrot.lane.b32.xlu0 %v803, 32
        %v858 = vpop.permute.xlu0 %857
        %861 = vrot.lane.b32.xlu0 %v819, 48
        %v862 = vpop.permute.xlu0 %861
        %865 = vrot.lane.b32.xlu0 %v811, 64
        %v866 = vpop.permute.xlu0 %865
        %869 = vrot.lane.b32.xlu0 %v821, 80
        %v870 = vpop.permute.xlu0 %869
        %873 = vrot.lane.b32.xlu0 %v815, 96
        %v874 = vpop.permute.xlu0 %873
        %877 = vrot.lane.b32.xlu0 %v823, 112
        %v878 = vpop.permute.xlu0 %877
        %v880 = vsel %vm419, %v743, %v826
        %v881 = vsel %vm421, %v880, %v830
        %v882 = vsel %vm423, %v881, %v834
        %v883 = vsel %vm425, %v882, %v838
        %v884 = vsel %vm427, %v883, %v842
        %v885 = vsel %vm429, %v884, %v846
        %v886 = vsel %vm431, %v885, %v850
        %v887 = vsel %vm419, %v799, %v854
        %v888 = vsel %vm421, %v887, %v858
        %v889 = vsel %vm423, %v888, %v862
        %v890 = vsel %vm425, %v889, %v866
        %v891 = vsel %vm427, %v890, %v870
        %v892 = vsel %vm429, %v891, %v874
        %v893 = vsel %vm431, %v892, %v878
        %894 = vst [vmem:[#allocation3 + $0x10] sm:$0xf] %v886
        %895 = vst [vmem:[#allocation3 + $0x18] sm:$0xf] %v893
        %v896 = vld [vmem:[#allocation2 + $0x1] sm:$0xff]
        %v897 = vld [vmem:[#allocation2 + $0x9] sm:$0xff]
        %v898 = vld [vmem:[#allocation2 + $0x19] sm:$0xff]
        %v899 = vld [vmem:[#allocation2 + $0x21] sm:$0xff]
        %v900 = vld [vmem:[#allocation2 + $0x31] sm:$0xff]
        %v901 = vld [vmem:[#allocation2 + $0x39] sm:$0xff]
        %v902 = vld [vmem:[#allocation2 + $0x49] sm:$0xff]
        %v903 = vld [vmem:[#allocation2 + $0x51] sm:$0xff]
        %v904 = vrot.slane %v900, 4
        %v905 = vsel %vm251, %v904, %v896
        %v906 = vrot.slane %v896, 4
        %v907 = vsel %vm251, %v900, %v906
        %v909 = vunpack.c.l.s4 1983009808
        %v910 = vunpack.c.0.s8 %v909
        %v911 = vperm.slane %v905, %v910
        %v913 = vunpack.c.l.s4 1983009808
        %v914 = vunpack.c.0.s8 %v913
        %v915 = vperm.slane %v907, %v914
        %v916 = vrot.slane %v902, 4
        %v917 = vsel %vm251, %v916, %v898
        %v918 = vrot.slane %v898, 4
        %v919 = vsel %vm251, %v902, %v918
        %v921 = vunpack.c.l.s4 1983009808
        %v922 = vunpack.c.0.s8 %v921
        %v923 = vperm.slane %v917, %v922
        %v925 = vunpack.c.l.s4 1983009808
        %v926 = vunpack.c.0.s8 %v925
        %v927 = vperm.slane %v919, %v926
        %v928 = vrot.slane %v923, 4
        %v929 = vsel %vm251, %v928, %v911
        %v930 = vrot.slane %v911, 4
        %v931 = vsel %vm251, %v923, %v930
        %v933 = vunpack.c.l.s4 1934713408
        %v934 = vunpack.c.0.s8 %v933
        %v935 = vperm.slane %v929, %v934
        %v937 = vunpack.c.l.s4 1934713408
        %v938 = vunpack.c.0.s8 %v937
        %v939 = vperm.slane %v931, %v938
        %v940 = vrot.slane %v927, 4
        %v941 = vsel %vm251, %v940, %v915
        %v942 = vrot.slane %v915, 4
        %v943 = vsel %vm251, %v927, %v942
        %v945 = vunpack.c.l.s4 1934713408
        %v946 = vunpack.c.0.s8 %v945
        %v947 = vperm.slane %v941, %v946
        %v949 = vunpack.c.l.s4 1934713408
        %v950 = vunpack.c.0.s8 %v949
        %v951 = vperm.slane %v943, %v950
        %v952 = vrot.slane %v935, 4
        %v953 = vsel %vm251, 0.0, %v952
        %v954 = vrot.slane %v939, 4
        %v955 = vsel %vm251, 0.0, %v954
        %v956 = vrot.slane %v947, 4
        %v957 = vsel %vm251, 0.0, %v956
        %v958 = vrot.slane %v951, 4
        %v959 = vsel %vm251, 0.0, %v958
        %v960 = vrot.slane %v901, 4
        %v961 = vsel %vm251, %v960, %v897
        %v962 = vrot.slane %v897, 4
        %v963 = vsel %vm251, %v901, %v962
        %v965 = vunpack.c.l.s4 1983009808
        %v966 = vunpack.c.0.s8 %v965
        %v967 = vperm.slane %v961, %v966
        %v969 = vunpack.c.l.s4 1983009808
        %v970 = vunpack.c.0.s8 %v969
        %v971 = vperm.slane %v963, %v970
        %v972 = vrot.slane %v903, 4
        %v973 = vsel %vm251, %v972, %v899
        %v974 = vrot.slane %v899, 4
        %v975 = vsel %vm251, %v903, %v974
        %v977 = vunpack.c.l.s4 1983009808
        %v978 = vunpack.c.0.s8 %v977
        %v979 = vperm.slane %v973, %v978
        %v981 = vunpack.c.l.s4 1983009808
        %v982 = vunpack.c.0.s8 %v981
        %v983 = vperm.slane %v975, %v982
        %v984 = vrot.slane %v979, 4
        %v985 = vsel %vm251, %v984, %v967
        %v986 = vrot.slane %v967, 4
        %v987 = vsel %vm251, %v979, %v986
        %v989 = vunpack.c.l.s4 1934713408
        %v990 = vunpack.c.0.s8 %v989
        %v991 = vperm.slane %v985, %v990
        %v993 = vunpack.c.l.s4 1934713408
        %v994 = vunpack.c.0.s8 %v993
        %v995 = vperm.slane %v987, %v994
        %v996 = vrot.slane %v983, 4
        %v997 = vsel %vm251, %v996, %v971
        %v998 = vrot.slane %v971, 4
        %v999 = vsel %vm251, %v983, %v998
        %v1001 = vunpack.c.l.s4 1934713408
        %v1002 = vunpack.c.0.s8 %v1001
        %v1003 = vperm.slane %v997, %v1002
        %v1005 = vunpack.c.l.s4 1934713408
        %v1006 = vunpack.c.0.s8 %v1005
        %v1007 = vperm.slane %v999, %v1006
        %v1008 = vrot.slane %v991, 4
        %v1009 = vsel %vm251, 0.0, %v1008
        %v1010 = vrot.slane %v995, 4
        %v1011 = vsel %vm251, 0.0, %v1010
        %v1012 = vrot.slane %v1003, 4
        %v1013 = vsel %vm251, 0.0, %v1012
        %v1014 = vrot.slane %v1007, 4
        %v1015 = vsel %vm251, 0.0, %v1014
        %1017 = vrot.lane.b32.xlu0 %v953, 16
        %v1018 = vpop.permute.xlu0 %1017
        %1021 = vrot.lane.b32.xlu0 %v939, 32
        %v1022 = vpop.permute.xlu0 %1021
        %1025 = vrot.lane.b32.xlu0 %v955, 48
        %v1026 = vpop.permute.xlu0 %1025
        %1029 = vrot.lane.b32.xlu0 %v947, 64
        %v1030 = vpop.permute.xlu0 %1029
        %1033 = vrot.lane.b32.xlu0 %v957, 80
        %v1034 = vpop.permute.xlu0 %1033
        %1037 = vrot.lane.b32.xlu0 %v951, 96
        %v1038 = vpop.permute.xlu0 %1037
        %1041 = vrot.lane.b32.xlu0 %v959, 112
        %v1042 = vpop.permute.xlu0 %1041
        %1045 = vrot.lane.b32.xlu0 %v1009, 16
        %v1046 = vpop.permute.xlu0 %1045
        %1049 = vrot.lane.b32.xlu0 %v995, 32
        %v1050 = vpop.permute.xlu0 %1049
        %1053 = vrot.lane.b32.xlu0 %v1011, 48
        %v1054 = vpop.permute.xlu0 %1053
        %1057 = vrot.lane.b32.xlu0 %v1003, 64
        %v1058 = vpop.permute.xlu0 %1057
        %1061 = vrot.lane.b32.xlu0 %v1013, 80
        %v1062 = vpop.permute.xlu0 %1061
        %1065 = vrot.lane.b32.xlu0 %v1007, 96
        %v1066 = vpop.permute.xlu0 %1065
        %1069 = vrot.lane.b32.xlu0 %v1015, 112
        %v1070 = vpop.permute.xlu0 %1069
        %v1072 = vsel %vm419, %v935, %v1018
        %v1073 = vsel %vm421, %v1072, %v1022
        %v1074 = vsel %vm423, %v1073, %v1026
        %v1075 = vsel %vm425, %v1074, %v1030
        %v1076 = vsel %vm427, %v1075, %v1034
        %v1077 = vsel %vm429, %v1076, %v1038
        %v1078 = vsel %vm431, %v1077, %v1042
        %v1079 = vsel %vm419, %v991, %v1046
        %v1080 = vsel %vm421, %v1079, %v1050
        %v1081 = vsel %vm423, %v1080, %v1054
        %v1082 = vsel %vm425, %v1081, %v1058
        %v1083 = vsel %vm427, %v1082, %v1062
        %v1084 = vsel %vm429, %v1083, %v1066
        %v1085 = vsel %vm431, %v1084, %v1070
        %v1088 = vrot.slane %v1078, 4
        %v1089 = vrot.slane %v1085, 4
        %1092 = vst [vmem:[#allocation3 + $0x10] sm:$0xf0] %v1088
        %1093 = vst [vmem:[#allocation3 + $0x18] sm:$0xf0] %v1089
        %v1094 = vld [vmem:[#allocation2 + $0x1] sm:$0xff]
        %v1095 = vld [vmem:[#allocation2 + $0x9] sm:$0xff]
        %v1096 = vld [vmem:[#allocation2 + $0x19] sm:$0xff]
        %v1097 = vld [vmem:[#allocation2 + $0x21] sm:$0xff]
        %v1098 = vld [vmem:[#allocation2 + $0x31] sm:$0xff]
        %v1099 = vld [vmem:[#allocation2 + $0x39] sm:$0xff]
        %v1100 = vld [vmem:[#allocation2 + $0x49] sm:$0xff]
        %v1101 = vld [vmem:[#allocation2 + $0x51] sm:$0xff]
        %1110 = vrot.lane.b32.xlu0 %v1094, 127
        %v1111 = vpop.permute.xlu0 %1110
        %1112 = vrot.lane.b32.xlu0 %v1095, 127
        %v1113 = vpop.permute.xlu0 %1112
        %1114 = vrot.lane.b32.xlu0 %v1096, 127
        %v1115 = vpop.permute.xlu0 %1114
        %1116 = vrot.lane.b32.xlu0 %v1097, 127
        %v1117 = vpop.permute.xlu0 %1116
        %1118 = vrot.lane.b32.xlu0 %v1098, 127
        %v1119 = vpop.permute.xlu0 %1118
        %1120 = vrot.lane.b32.xlu0 %v1099, 127
        %v1121 = vpop.permute.xlu0 %1120
        %1122 = vrot.lane.b32.xlu0 %v1100, 127
        %v1123 = vpop.permute.xlu0 %1122
        %1124 = vrot.lane.b32.xlu0 %v1101, 127
        %v1125 = vpop.permute.xlu0 %1124
        %v1134 = vrot.slane %v1119, 4
        %v1135 = vsel %vm251, %v1134, %v1111
        %v1136 = vrot.slane %v1111, 4
        %v1137 = vsel %vm251, %v1119, %v1136
        %v1139 = vunpack.c.l.s4 1983009808
        %v1140 = vunpack.c.0.s8 %v1139
        %v1141 = vperm.slane %v1135, %v1140
        %v1143 = vunpack.c.l.s4 1983009808
        %v1144 = vunpack.c.0.s8 %v1143
        %v1145 = vperm.slane %v1137, %v1144
        %v1146 = vrot.slane %v1123, 4
        %v1147 = vsel %vm251, %v1146, %v1115
        %v1148 = vrot.slane %v1115, 4
        %v1149 = vsel %vm251, %v1123, %v1148
        %v1151 = vunpack.c.l.s4 1983009808
        %v1152 = vunpack.c.0.s8 %v1151
        %v1153 = vperm.slane %v1147, %v1152
        %v1155 = vunpack.c.l.s4 1983009808
        %v1156 = vunpack.c.0.s8 %v1155
        %v1157 = vperm.slane %v1149, %v1156
        %v1158 = vrot.slane %v1153, 4
        %v1159 = vsel %vm251, %v1158, %v1141
        %v1160 = vrot.slane %v1141, 4
        %v1161 = vsel %vm251, %v1153, %v1160
        %v1163 = vunpack.c.l.s4 1934713408
        %v1164 = vunpack.c.0.s8 %v1163
        %v1165 = vperm.slane %v1159, %v1164
        %v1167 = vunpack.c.l.s4 1934713408
        %v1168 = vunpack.c.0.s8 %v1167
        %v1169 = vperm.slane %v1161, %v1168
        %v1170 = vrot.slane %v1157, 4
        %v1171 = vsel %vm251, %v1170, %v1145
        %v1172 = vrot.slane %v1145, 4
        %v1173 = vsel %vm251, %v1157, %v1172
        %v1175 = vunpack.c.l.s4 1934713408
        %v1176 = vunpack.c.0.s8 %v1175
        %v1177 = vperm.slane %v1171, %v1176
        %v1179 = vunpack.c.l.s4 1934713408
        %v1180 = vunpack.c.0.s8 %v1179
        %v1181 = vperm.slane %v1173, %v1180
        %v1182 = vrot.slane %v1165, 4
        %v1183 = vsel %vm251, 0.0, %v1182
        %v1184 = vrot.slane %v1169, 4
        %v1185 = vsel %vm251, 0.0, %v1184
        %v1186 = vrot.slane %v1177, 4
        %v1187 = vsel %vm251, 0.0, %v1186
        %v1188 = vrot.slane %v1181, 4
        %v1189 = vsel %vm251, 0.0, %v1188
        %v1190 = vrot.slane %v1121, 4
        %v1191 = vsel %vm251, %v1190, %v1113
        %v1192 = vrot.slane %v1113, 4
        %v1193 = vsel %vm251, %v1121, %v1192
        %v1195 = vunpack.c.l.s4 1983009808
        %v1196 = vunpack.c.0.s8 %v1195
        %v1197 = vperm.slane %v1191, %v1196
        %v1199 = vunpack.c.l.s4 1983009808
        %v1200 = vunpack.c.0.s8 %v1199
        %v1201 = vperm.slane %v1193, %v1200
        %v1202 = vrot.slane %v1125, 4
        %v1203 = vsel %vm251, %v1202, %v1117
        %v1204 = vrot.slane %v1117, 4
        %v1205 = vsel %vm251, %v1125, %v1204
        %v1207 = vunpack.c.l.s4 1983009808
        %v1208 = vunpack.c.0.s8 %v1207
        %v1209 = vperm.slane %v1203, %v1208
        %v1211 = vunpack.c.l.s4 1983009808
        %v1212 = vunpack.c.0.s8 %v1211
        %v1213 = vperm.slane %v1205, %v1212
        %v1214 = vrot.slane %v1209, 4
        %v1215 = vsel %vm251, %v1214, %v1197
        %v1216 = vrot.slane %v1197, 4
        %v1217 = vsel %vm251, %v1209, %v1216
        %v1219 = vunpack.c.l.s4 1934713408
        %v1220 = vunpack.c.0.s8 %v1219
        %v1221 = vperm.slane %v1215, %v1220
        %v1223 = vunpack.c.l.s4 1934713408
        %v1224 = vunpack.c.0.s8 %v1223
        %v1225 = vperm.slane %v1217, %v1224
        %v1226 = vrot.slane %v1213, 4
        %v1227 = vsel %vm251, %v1226, %v1201
        %v1228 = vrot.slane %v1201, 4
        %v1229 = vsel %vm251, %v1213, %v1228
        %v1231 = vunpack.c.l.s4 1934713408
        %v1232 = vunpack.c.0.s8 %v1231
        %v1233 = vperm.slane %v1227, %v1232
        %v1235 = vunpack.c.l.s4 1934713408
        %v1236 = vunpack.c.0.s8 %v1235
        %v1237 = vperm.slane %v1229, %v1236
        %v1238 = vrot.slane %v1221, 4
        %v1239 = vsel %vm251, 0.0, %v1238
        %v1240 = vrot.slane %v1225, 4
        %v1241 = vsel %vm251, 0.0, %v1240
        %v1242 = vrot.slane %v1233, 4
        %v1243 = vsel %vm251, 0.0, %v1242
        %v1244 = vrot.slane %v1237, 4
        %v1245 = vsel %vm251, 0.0, %v1244
        %1247 = vrot.lane.b32.xlu0 %v1183, 16
        %v1248 = vpop.permute.xlu0 %1247
        %1251 = vrot.lane.b32.xlu0 %v1169, 32
        %v1252 = vpop.permute.xlu0 %1251
        %1255 = vrot.lane.b32.xlu0 %v1185, 48
        %v1256 = vpop.permute.xlu0 %1255
        %1259 = vrot.lane.b32.xlu0 %v1177, 64
        %v1260 = vpop.permute.xlu0 %1259
        %1263 = vrot.lane.b32.xlu0 %v1187, 80
        %v1264 = vpop.permute.xlu0 %1263
        %1267 = vrot.lane.b32.xlu0 %v1181, 96
        %v1268 = vpop.permute.xlu0 %1267
        %1271 = vrot.lane.b32.xlu0 %v1189, 112
        %v1272 = vpop.permute.xlu0 %1271
        %1275 = vrot.lane.b32.xlu0 %v1239, 16
        %v1276 = vpop.permute.xlu0 %1275
        %1279 = vrot.lane.b32.xlu0 %v1225, 32
        %v1280 = vpop.permute.xlu0 %1279
        %1283 = vrot.lane.b32.xlu0 %v1241, 48
        %v1284 = vpop.permute.xlu0 %1283
        %1287 = vrot.lane.b32.xlu0 %v1233, 64
        %v1288 = vpop.permute.xlu0 %1287
        %1291 = vrot.lane.b32.xlu0 %v1243, 80
        %v1292 = vpop.permute.xlu0 %1291
        %1295 = vrot.lane.b32.xlu0 %v1237, 96
        %v1296 = vpop.permute.xlu0 %1295
        %1299 = vrot.lane.b32.xlu0 %v1245, 112
        %v1300 = vpop.permute.xlu0 %1299
        %v1302 = vsel %vm419, %v1165, %v1248
        %v1303 = vsel %vm421, %v1302, %v1252
        %v1304 = vsel %vm423, %v1303, %v1256
        %v1305 = vsel %vm425, %v1304, %v1260
        %v1306 = vsel %vm427, %v1305, %v1264
        %v1307 = vsel %vm429, %v1306, %v1268
        %v1308 = vsel %vm431, %v1307, %v1272
        %v1309 = vsel %vm419, %v1221, %v1276
        %v1310 = vsel %vm421, %v1309, %v1280
        %v1311 = vsel %vm423, %v1310, %v1284
        %v1312 = vsel %vm425, %v1311, %v1288
        %v1313 = vsel %vm427, %v1312, %v1292
        %v1314 = vsel %vm429, %v1313, %v1296
        %v1315 = vsel %vm431, %v1314, %v1300
        %1316 = vst [vmem:[#allocation3 + $0x20] sm:$0xf] %v1308
        %1317 = vst [vmem:[#allocation3 + $0x28] sm:$0xf] %v1315
        %v1318 = vld [vmem:[#allocation2 + $0x1] sm:$0xff]
        %v1319 = vld [vmem:[#allocation2 + $0x9] sm:$0xff]
        %v1320 = vld [vmem:[#allocation2 + $0x19] sm:$0xff]
        %v1321 = vld [vmem:[#allocation2 + $0x21] sm:$0xff]
        %v1322 = vld [vmem:[#allocation2 + $0x31] sm:$0xff]
        %v1323 = vld [vmem:[#allocation2 + $0x39] sm:$0xff]
        %v1324 = vld [vmem:[#allocation2 + $0x49] sm:$0xff]
        %v1325 = vld [vmem:[#allocation2 + $0x51] sm:$0xff]
        %1334 = vrot.lane.b32.xlu0 %v1318, 126
        %v1335 = vpop.permute.xlu0 %1334
        %1336 = vrot.lane.b32.xlu0 %v1319, 126
        %v1337 = vpop.permute.xlu0 %1336
        %1338 = vrot.lane.b32.xlu0 %v1320, 126
        %v1339 = vpop.permute.xlu0 %1338
        %1340 = vrot.lane.b32.xlu0 %v1321, 126
        %v1341 = vpop.permute.xlu0 %1340
        %1342 = vrot.lane.b32.xlu0 %v1322, 126
        %v1343 = vpop.permute.xlu0 %1342
        %1344 = vrot.lane.b32.xlu0 %v1323, 126
        %v1345 = vpop.permute.xlu0 %1344
        %1346 = vrot.lane.b32.xlu0 %v1324, 126
        %v1347 = vpop.permute.xlu0 %1346
        %1348 = vrot.lane.b32.xlu0 %v1325, 126
        %v1349 = vpop.permute.xlu0 %1348
        %v1358 = vrot.slane %v1343, 4
        %v1359 = vsel %vm251, %v1358, %v1335
        %v1360 = vrot.slane %v1335, 4
        %v1361 = vsel %vm251, %v1343, %v1360
        %v1363 = vunpack.c.l.s4 1983009808
        %v1364 = vunpack.c.0.s8 %v1363
        %v1365 = vperm.slane %v1359, %v1364
        %v1367 = vunpack.c.l.s4 1983009808
        %v1368 = vunpack.c.0.s8 %v1367
        %v1369 = vperm.slane %v1361, %v1368
        %v1370 = vrot.slane %v1347, 4
        %v1371 = vsel %vm251, %v1370, %v1339
        %v1372 = vrot.slane %v1339, 4
        %v1373 = vsel %vm251, %v1347, %v1372
        %v1375 = vunpack.c.l.s4 1983009808
        %v1376 = vunpack.c.0.s8 %v1375
        %v1377 = vperm.slane %v1371, %v1376
        %v1379 = vunpack.c.l.s4 1983009808
        %v1380 = vunpack.c.0.s8 %v1379
        %v1381 = vperm.slane %v1373, %v1380
        %v1382 = vrot.slane %v1377, 4
        %v1383 = vsel %vm251, %v1382, %v1365
        %v1384 = vrot.slane %v1365, 4
        %v1385 = vsel %vm251, %v1377, %v1384
        %v1387 = vunpack.c.l.s4 1934713408
        %v1388 = vunpack.c.0.s8 %v1387
        %v1389 = vperm.slane %v1383, %v1388
        %v1391 = vunpack.c.l.s4 1934713408
        %v1392 = vunpack.c.0.s8 %v1391
        %v1393 = vperm.slane %v1385, %v1392
        %v1394 = vrot.slane %v1381, 4
        %v1395 = vsel %vm251, %v1394, %v1369
        %v1396 = vrot.slane %v1369, 4
        %v1397 = vsel %vm251, %v1381, %v1396
        %v1399 = vunpack.c.l.s4 1934713408
        %v1400 = vunpack.c.0.s8 %v1399
        %v1401 = vperm.slane %v1395, %v1400
        %v1403 = vunpack.c.l.s4 1934713408
        %v1404 = vunpack.c.0.s8 %v1403
        %v1405 = vperm.slane %v1397, %v1404
        %v1406 = vrot.slane %v1389, 4
        %v1407 = vsel %vm251, 0.0, %v1406
        %v1408 = vrot.slane %v1393, 4
        %v1409 = vsel %vm251, 0.0, %v1408
        %v1410 = vrot.slane %v1401, 4
        %v1411 = vsel %vm251, 0.0, %v1410
        %v1412 = vrot.slane %v1405, 4
        %v1413 = vsel %vm251, 0.0, %v1412
        %v1414 = vrot.slane %v1345, 4
        %v1415 = vsel %vm251, %v1414, %v1337
        %v1416 = vrot.slane %v1337, 4
        %v1417 = vsel %vm251, %v1345, %v1416
        %v1419 = vunpack.c.l.s4 1983009808
        %v1420 = vunpack.c.0.s8 %v1419
        %v1421 = vperm.slane %v1415, %v1420
        %v1423 = vunpack.c.l.s4 1983009808
        %v1424 = vunpack.c.0.s8 %v1423
        %v1425 = vperm.slane %v1417, %v1424
        %v1426 = vrot.slane %v1349, 4
        %v1427 = vsel %vm251, %v1426, %v1341
        %v1428 = vrot.slane %v1341, 4
        %v1429 = vsel %vm251, %v1349, %v1428
        %v1431 = vunpack.c.l.s4 1983009808
        %v1432 = vunpack.c.0.s8 %v1431
        %v1433 = vperm.slane %v1427, %v1432
        %v1435 = vunpack.c.l.s4 1983009808
        %v1436 = vunpack.c.0.s8 %v1435
        %v1437 = vperm.slane %v1429, %v1436
        %v1438 = vrot.slane %v1433, 4
        %v1439 = vsel %vm251, %v1438, %v1421
        %v1440 = vrot.slane %v1421, 4
        %v1441 = vsel %vm251, %v1433, %v1440
        %v1443 = vunpack.c.l.s4 1934713408
        %v1444 = vunpack.c.0.s8 %v1443
        %v1445 = vperm.slane %v1439, %v1444
        %v1447 = vunpack.c.l.s4 1934713408
        %v1448 = vunpack.c.0.s8 %v1447
        %v1449 = vperm.slane %v1441, %v1448
        %v1450 = vrot.slane %v1437, 4
        %v1451 = vsel %vm251, %v1450, %v1425
        %v1452 = vrot.slane %v1425, 4
        %v1453 = vsel %vm251, %v1437, %v1452
        %v1455 = vunpack.c.l.s4 1934713408
        %v1456 = vunpack.c.0.s8 %v1455
        %v1457 = vperm.slane %v1451, %v1456
        %v1459 = vunpack.c.l.s4 1934713408
        %v1460 = vunpack.c.0.s8 %v1459
        %v1461 = vperm.slane %v1453, %v1460
        %v1462 = vrot.slane %v1445, 4
        %v1463 = vsel %vm251, 0.0, %v1462
        %v1464 = vrot.slane %v1449, 4
        %v1465 = vsel %vm251, 0.0, %v1464
        %v1466 = vrot.slane %v1457, 4
        %v1467 = vsel %vm251, 0.0, %v1466
        %v1468 = vrot.slane %v1461, 4
        %v1469 = vsel %vm251, 0.0, %v1468
        %1471 = vrot.lane.b32.xlu0 %v1407, 16
        %v1472 = vpop.permute.xlu0 %1471
        %1475 = vrot.lane.b32.xlu0 %v1393, 32
        %v1476 = vpop.permute.xlu0 %1475
        %1479 = vrot.lane.b32.xlu0 %v1409, 48
        %v1480 = vpop.permute.xlu0 %1479
        %1483 = vrot.lane.b32.xlu0 %v1401, 64
        %v1484 = vpop.permute.xlu0 %1483
        %1487 = vrot.lane.b32.xlu0 %v1411, 80
        %v1488 = vpop.permute.xlu0 %1487
        %1491 = vrot.lane.b32.xlu0 %v1405, 96
        %v1492 = vpop.permute.xlu0 %1491
        %1495 = vrot.lane.b32.xlu0 %v1413, 112
        %v1496 = vpop.permute.xlu0 %1495
        %1499 = vrot.lane.b32.xlu0 %v1463, 16
        %v1500 = vpop.permute.xlu0 %1499
        %1503 = vrot.lane.b32.xlu0 %v1449, 32
        %v1504 = vpop.permute.xlu0 %1503
        %1507 = vrot.lane.b32.xlu0 %v1465, 48
        %v1508 = vpop.permute.xlu0 %1507
        %1511 = vrot.lane.b32.xlu0 %v1457, 64
        %v1512 = vpop.permute.xlu0 %1511
        %1515 = vrot.lane.b32.xlu0 %v1467, 80
        %v1516 = vpop.permute.xlu0 %1515
        %1519 = vrot.lane.b32.xlu0 %v1461, 96
        %v1520 = vpop.permute.xlu0 %1519
        %1523 = vrot.lane.b32.xlu0 %v1469, 112
        %v1524 = vpop.permute.xlu0 %1523
        %v1526 = vsel %vm419, %v1389, %v1472
        %v1527 = vsel %vm421, %v1526, %v1476
        %v1528 = vsel %vm423, %v1527, %v1480
        %v1529 = vsel %vm425, %v1528, %v1484
        %v1530 = vsel %vm427, %v1529, %v1488
        %v1531 = vsel %vm429, %v1530, %v1492
        %v1532 = vsel %vm431, %v1531, %v1496
        %v1533 = vsel %vm419, %v1445, %v1500
        %v1534 = vsel %vm421, %v1533, %v1504
        %v1535 = vsel %vm423, %v1534, %v1508
        %v1536 = vsel %vm425, %v1535, %v1512
        %v1537 = vsel %vm427, %v1536, %v1516
        %v1538 = vsel %vm429, %v1537, %v1520
        %v1539 = vsel %vm431, %v1538, %v1524
        %v1542 = vrot.slane %v1532, 4
        %v1543 = vrot.slane %v1539, 4
        %1546 = vst [vmem:[#allocation3 + $0x20] sm:$0xf0] %v1542
        %1547 = vst [vmem:[#allocation3 + $0x28] sm:$0xf0] %v1543
        %v1548 = vld [vmem:[#allocation2 + $0x2] sm:$0xff]
        %v1549 = vld [vmem:[#allocation2 + $0xa] sm:$0xff]
        %v1550 = vld [vmem:[#allocation2 + $0x1a] sm:$0xff]
        %v1551 = vld [vmem:[#allocation2 + $0x22] sm:$0xff]
        %v1552 = vld [vmem:[#allocation2 + $0x32] sm:$0xff]
        %v1553 = vld [vmem:[#allocation2 + $0x3a] sm:$0xff]
        %v1554 = vld [vmem:[#allocation2 + $0x4a] sm:$0xff]
        %v1555 = vld [vmem:[#allocation2 + $0x52] sm:$0xff]
        %v1556 = vrot.slane %v1552, 4
        %v1557 = vsel %vm251, %v1556, %v1548
        %v1558 = vrot.slane %v1548, 4
        %v1559 = vsel %vm251, %v1552, %v1558
        %v1561 = vunpack.c.l.s4 1983009808
        %v1562 = vunpack.c.0.s8 %v1561
        %v1563 = vperm.slane %v1557, %v1562
        %v1565 = vunpack.c.l.s4 1983009808
        %v1566 = vunpack.c.0.s8 %v1565
        %v1567 = vperm.slane %v1559, %v1566
        %v1568 = vrot.slane %v1554, 4
        %v1569 = vsel %vm251, %v1568, %v1550
        %v1570 = vrot.slane %v1550, 4
        %v1571 = vsel %vm251, %v1554, %v1570
        %v1573 = vunpack.c.l.s4 1983009808
        %v1574 = vunpack.c.0.s8 %v1573
        %v1575 = vperm.slane %v1569, %v1574
        %v1577 = vunpack.c.l.s4 1983009808
        %v1578 = vunpack.c.0.s8 %v1577
        %v1579 = vperm.slane %v1571, %v1578
        %v1580 = vrot.slane %v1575, 4
        %v1581 = vsel %vm251, %v1580, %v1563
        %v1582 = vrot.slane %v1563, 4
        %v1583 = vsel %vm251, %v1575, %v1582
        %v1585 = vunpack.c.l.s4 1934713408
        %v1586 = vunpack.c.0.s8 %v1585
        %v1587 = vperm.slane %v1581, %v1586
        %v1589 = vunpack.c.l.s4 1934713408
        %v1590 = vunpack.c.0.s8 %v1589
        %v1591 = vperm.slane %v1583, %v1590
        %v1592 = vrot.slane %v1579, 4
        %v1593 = vsel %vm251, %v1592, %v1567
        %v1594 = vrot.slane %v1567, 4
        %v1595 = vsel %vm251, %v1579, %v1594
        %v1597 = vunpack.c.l.s4 1934713408
        %v1598 = vunpack.c.0.s8 %v1597
        %v1599 = vperm.slane %v1593, %v1598
        %v1601 = vunpack.c.l.s4 1934713408
        %v1602 = vunpack.c.0.s8 %v1601
        %v1603 = vperm.slane %v1595, %v1602
        %v1604 = vrot.slane %v1587, 4
        %v1605 = vsel %vm251, 0.0, %v1604
        %v1606 = vrot.slane %v1591, 4
        %v1607 = vsel %vm251, 0.0, %v1606
        %v1608 = vrot.slane %v1599, 4
        %v1609 = vsel %vm251, 0.0, %v1608
        %v1610 = vrot.slane %v1603, 4
        %v1611 = vsel %vm251, 0.0, %v1610
        %v1612 = vrot.slane %v1553, 4
        %v1613 = vsel %vm251, %v1612, %v1549
        %v1614 = vrot.slane %v1549, 4
        %v1615 = vsel %vm251, %v1553, %v1614
        %v1617 = vunpack.c.l.s4 1983009808
        %v1618 = vunpack.c.0.s8 %v1617
        %v1619 = vperm.slane %v1613, %v1618
        %v1621 = vunpack.c.l.s4 1983009808
        %v1622 = vunpack.c.0.s8 %v1621
        %v1623 = vperm.slane %v1615, %v1622
        %v1624 = vrot.slane %v1555, 4
        %v1625 = vsel %vm251, %v1624, %v1551
        %v1626 = vrot.slane %v1551, 4
        %v1627 = vsel %vm251, %v1555, %v1626
        %v1629 = vunpack.c.l.s4 1983009808
        %v1630 = vunpack.c.0.s8 %v1629
        %v1631 = vperm.slane %v1625, %v1630
        %v1633 = vunpack.c.l.s4 1983009808
        %v1634 = vunpack.c.0.s8 %v1633
        %v1635 = vperm.slane %v1627, %v1634
        %v1636 = vrot.slane %v1631, 4
        %v1637 = vsel %vm251, %v1636, %v1619
        %v1638 = vrot.slane %v1619, 4
        %v1639 = vsel %vm251, %v1631, %v1638
        %v1641 = vunpack.c.l.s4 1934713408
        %v1642 = vunpack.c.0.s8 %v1641
        %v1643 = vperm.slane %v1637, %v1642
        %v1645 = vunpack.c.l.s4 1934713408
        %v1646 = vunpack.c.0.s8 %v1645
        %v1647 = vperm.slane %v1639, %v1646
        %v1648 = vrot.slane %v1635, 4
        %v1649 = vsel %vm251, %v1648, %v1623
        %v1650 = vrot.slane %v1623, 4
        %v1651 = vsel %vm251, %v1635, %v1650
        %v1653 = vunpack.c.l.s4 1934713408
        %v1654 = vunpack.c.0.s8 %v1653
        %v1655 = vperm.slane %v1649, %v1654
        %v1657 = vunpack.c.l.s4 1934713408
        %v1658 = vunpack.c.0.s8 %v1657
        %v1659 = vperm.slane %v1651, %v1658
        %v1660 = vrot.slane %v1643, 4
        %v1661 = vsel %vm251, 0.0, %v1660
        %v1662 = vrot.slane %v1647, 4
        %v1663 = vsel %vm251, 0.0, %v1662
        %v1664 = vrot.slane %v1655, 4
        %v1665 = vsel %vm251, 0.0, %v1664
        %v1666 = vrot.slane %v1659, 4
        %v1667 = vsel %vm251, 0.0, %v1666
        %1669 = vrot.lane.b32.xlu0 %v1605, 16
        %v1670 = vpop.permute.xlu0 %1669
        %1673 = vrot.lane.b32.xlu0 %v1591, 32
        %v1674 = vpop.permute.xlu0 %1673
        %1677 = vrot.lane.b32.xlu0 %v1607, 48
        %v1678 = vpop.permute.xlu0 %1677
        %1681 = vrot.lane.b32.xlu0 %v1599, 64
        %v1682 = vpop.permute.xlu0 %1681
        %1685 = vrot.lane.b32.xlu0 %v1609, 80
        %v1686 = vpop.permute.xlu0 %1685
        %1689 = vrot.lane.b32.xlu0 %v1603, 96
        %v1690 = vpop.permute.xlu0 %1689
        %1693 = vrot.lane.b32.xlu0 %v1611, 112
        %v1694 = vpop.permute.xlu0 %1693
        %1697 = vrot.lane.b32.xlu0 %v1661, 16
        %v1698 = vpop.permute.xlu0 %1697
        %1701 = vrot.lane.b32.xlu0 %v1647, 32
        %v1702 = vpop.permute.xlu0 %1701
        %1705 = vrot.lane.b32.xlu0 %v1663, 48
        %v1706 = vpop.permute.xlu0 %1705
        %1709 = vrot.lane.b32.xlu0 %v1655, 64
        %v1710 = vpop.permute.xlu0 %1709
        %1713 = vrot.lane.b32.xlu0 %v1665, 80
        %v1714 = vpop.permute.xlu0 %1713
        %1717 = vrot.lane.b32.xlu0 %v1659, 96
        %v1718 = vpop.permute.xlu0 %1717
        %1721 = vrot.lane.b32.xlu0 %v1667, 112
        %v1722 = vpop.permute.xlu0 %1721
        %v1724 = vsel %vm419, %v1587, %v1670
        %v1725 = vsel %vm421, %v1724, %v1674
        %v1726 = vsel %vm423, %v1725, %v1678
        %v1727 = vsel %vm425, %v1726, %v1682
        %v1728 = vsel %vm427, %v1727, %v1686
        %v1729 = vsel %vm429, %v1728, %v1690
        %v1730 = vsel %vm431, %v1729, %v1694
        %v1731 = vsel %vm419, %v1643, %v1698
        %v1732 = vsel %vm421, %v1731, %v1702
        %v1733 = vsel %vm423, %v1732, %v1706
        %v1734 = vsel %vm425, %v1733, %v1710
        %v1735 = vsel %vm427, %v1734, %v1714
        %v1736 = vsel %vm429, %v1735, %v1718
        %v1737 = vsel %vm431, %v1736, %v1722
        %1738 = vst [vmem:[#allocation3 + $0x30] sm:$0xf] %v1730
        %1739 = vst [vmem:[#allocation3 + $0x38] sm:$0xf] %v1737
        %v1740 = vld [vmem:[#allocation2 + $0x2] sm:$0xff]
        %v1741 = vld [vmem:[#allocation2 + $0xa] sm:$0xff]
        %v1742 = vld [vmem:[#allocation2 + $0x1a] sm:$0xff]
        %v1743 = vld [vmem:[#allocation2 + $0x22] sm:$0xff]
        %v1744 = vld [vmem:[#allocation2 + $0x32] sm:$0xff]
        %v1745 = vld [vmem:[#allocation2 + $0x3a] sm:$0xff]
        %v1746 = vld [vmem:[#allocation2 + $0x4a] sm:$0xff]
        %v1747 = vld [vmem:[#allocation2 + $0x52] sm:$0xff]
        %1756 = vrot.lane.b32.xlu0 %v1740, 127
        %v1757 = vpop.permute.xlu0 %1756
        %1758 = vrot.lane.b32.xlu0 %v1741, 127
        %v1759 = vpop.permute.xlu0 %1758
        %1760 = vrot.lane.b32.xlu0 %v1742, 127
        %v1761 = vpop.permute.xlu0 %1760
        %1762 = vrot.lane.b32.xlu0 %v1743, 127
        %v1763 = vpop.permute.xlu0 %1762
        %1764 = vrot.lane.b32.xlu0 %v1744, 127
        %v1765 = vpop.permute.xlu0 %1764
        %1766 = vrot.lane.b32.xlu0 %v1745, 127
        %v1767 = vpop.permute.xlu0 %1766
        %1768 = vrot.lane.b32.xlu0 %v1746, 127
        %v1769 = vpop.permute.xlu0 %1768
        %1770 = vrot.lane.b32.xlu0 %v1747, 127
        %v1771 = vpop.permute.xlu0 %1770
        %v1780 = vrot.slane %v1765, 4
        %v1781 = vsel %vm251, %v1780, %v1757
        %v1782 = vrot.slane %v1757, 4
        %v1783 = vsel %vm251, %v1765, %v1782
        %v1785 = vunpack.c.l.s4 1983009808
        %v1786 = vunpack.c.0.s8 %v1785
        %v1787 = vperm.slane %v1781, %v1786
        %v1789 = vunpack.c.l.s4 1983009808
        %v1790 = vunpack.c.0.s8 %v1789
        %v1791 = vperm.slane %v1783, %v1790
        %v1792 = vrot.slane %v1769, 4
        %v1793 = vsel %vm251, %v1792, %v1761
        %v1794 = vrot.slane %v1761, 4
        %v1795 = vsel %vm251, %v1769, %v1794
        %v1797 = vunpack.c.l.s4 1983009808
        %v1798 = vunpack.c.0.s8 %v1797
        %v1799 = vperm.slane %v1793, %v1798
        %v1801 = vunpack.c.l.s4 1983009808
        %v1802 = vunpack.c.0.s8 %v1801
        %v1803 = vperm.slane %v1795, %v1802
        %v1804 = vrot.slane %v1799, 4
        %v1805 = vsel %vm251, %v1804, %v1787
        %v1806 = vrot.slane %v1787, 4
        %v1807 = vsel %vm251, %v1799, %v1806
        %v1809 = vunpack.c.l.s4 1934713408
        %v1810 = vunpack.c.0.s8 %v1809
        %v1811 = vperm.slane %v1805, %v1810
        %v1813 = vunpack.c.l.s4 1934713408
        %v1814 = vunpack.c.0.s8 %v1813
        %v1815 = vperm.slane %v1807, %v1814
        %v1816 = vrot.slane %v1803, 4
        %v1817 = vsel %vm251, %v1816, %v1791
        %v1818 = vrot.slane %v1791, 4
        %v1819 = vsel %vm251, %v1803, %v1818
        %v1821 = vunpack.c.l.s4 1934713408
        %v1822 = vunpack.c.0.s8 %v1821
        %v1823 = vperm.slane %v1817, %v1822
        %v1825 = vunpack.c.l.s4 1934713408
        %v1826 = vunpack.c.0.s8 %v1825
        %v1827 = vperm.slane %v1819, %v1826
        %v1828 = vrot.slane %v1811, 4
        %v1829 = vsel %vm251, 0.0, %v1828
        %v1830 = vrot.slane %v1815, 4
        %v1831 = vsel %vm251, 0.0, %v1830
        %v1832 = vrot.slane %v1823, 4
        %v1833 = vsel %vm251, 0.0, %v1832
        %v1834 = vrot.slane %v1827, 4
        %v1835 = vsel %vm251, 0.0, %v1834
        %v1836 = vrot.slane %v1767, 4
        %v1837 = vsel %vm251, %v1836, %v1759
        %v1838 = vrot.slane %v1759, 4
        %v1839 = vsel %vm251, %v1767, %v1838
        %v1841 = vunpack.c.l.s4 1983009808
        %v1842 = vunpack.c.0.s8 %v1841
        %v1843 = vperm.slane %v1837, %v1842
        %v1845 = vunpack.c.l.s4 1983009808
        %v1846 = vunpack.c.0.s8 %v1845
        %v1847 = vperm.slane %v1839, %v1846
        %v1848 = vrot.slane %v1771, 4
        %v1849 = vsel %vm251, %v1848, %v1763
        %v1850 = vrot.slane %v1763, 4
        %v1851 = vsel %vm251, %v1771, %v1850
        %v1853 = vunpack.c.l.s4 1983009808
        %v1854 = vunpack.c.0.s8 %v1853
        %v1855 = vperm.slane %v1849, %v1854
        %v1857 = vunpack.c.l.s4 1983009808
        %v1858 = vunpack.c.0.s8 %v1857
        %v1859 = vperm.slane %v1851, %v1858
        %v1860 = vrot.slane %v1855, 4
        %v1861 = vsel %vm251, %v1860, %v1843
        %v1862 = vrot.slane %v1843, 4
        %v1863 = vsel %vm251, %v1855, %v1862
        %v1865 = vunpack.c.l.s4 1934713408
        %v1866 = vunpack.c.0.s8 %v1865
        %v1867 = vperm.slane %v1861, %v1866
        %v1869 = vunpack.c.l.s4 1934713408
        %v1870 = vunpack.c.0.s8 %v1869
        %v1871 = vperm.slane %v1863, %v1870
        %v1872 = vrot.slane %v1859, 4
        %v1873 = vsel %vm251, %v1872, %v1847
        %v1874 = vrot.slane %v1847, 4
        %v1875 = vsel %vm251, %v1859, %v1874
        %v1877 = vunpack.c.l.s4 1934713408
        %v1878 = vunpack.c.0.s8 %v1877
        %v1879 = vperm.slane %v1873, %v1878
        %v1881 = vunpack.c.l.s4 1934713408
        %v1882 = vunpack.c.0.s8 %v1881
        %v1883 = vperm.slane %v1875, %v1882
        %v1884 = vrot.slane %v1867, 4
        %v1885 = vsel %vm251, 0.0, %v1884
        %v1886 = vrot.slane %v1871, 4
        %v1887 = vsel %vm251, 0.0, %v1886
        %v1888 = vrot.slane %v1879, 4
        %v1889 = vsel %vm251, 0.0, %v1888
        %v1890 = vrot.slane %v1883, 4
        %v1891 = vsel %vm251, 0.0, %v1890
        %1893 = vrot.lane.b32.xlu0 %v1829, 16
        %v1894 = vpop.permute.xlu0 %1893
        %1897 = vrot.lane.b32.xlu0 %v1815, 32
        %v1898 = vpop.permute.xlu0 %1897
        %1901 = vrot.lane.b32.xlu0 %v1831, 48
        %v1902 = vpop.permute.xlu0 %1901
        %1905 = vrot.lane.b32.xlu0 %v1823, 64
        %v1906 = vpop.permute.xlu0 %1905
        %1909 = vrot.lane.b32.xlu0 %v1833, 80
        %v1910 = vpop.permute.xlu0 %1909
        %1913 = vrot.lane.b32.xlu0 %v1827, 96
        %v1914 = vpop.permute.xlu0 %1913
        %1917 = vrot.lane.b32.xlu0 %v1835, 112
        %v1918 = vpop.permute.xlu0 %1917
        %1921 = vrot.lane.b32.xlu0 %v1885, 16
        %v1922 = vpop.permute.xlu0 %1921
        %1925 = vrot.lane.b32.xlu0 %v1871, 32
        %v1926 = vpop.permute.xlu0 %1925
        %1929 = vrot.lane.b32.xlu0 %v1887, 48
        %v1930 = vpop.permute.xlu0 %1929
        %1933 = vrot.lane.b32.xlu0 %v1879, 64
        %v1934 = vpop.permute.xlu0 %1933
        %1937 = vrot.lane.b32.xlu0 %v1889, 80
        %v1938 = vpop.permute.xlu0 %1937
        %1941 = vrot.lane.b32.xlu0 %v1883, 96
        %v1942 = vpop.permute.xlu0 %1941
        %1945 = vrot.lane.b32.xlu0 %v1891, 112
        %v1946 = vpop.permute.xlu0 %1945
        %v1948 = vsel %vm419, %v1811, %v1894
        %v1949 = vsel %vm421, %v1948, %v1898
        %v1950 = vsel %vm423, %v1949, %v1902
        %v1951 = vsel %vm425, %v1950, %v1906
        %v1952 = vsel %vm427, %v1951, %v1910
        %v1953 = vsel %vm429, %v1952, %v1914
        %v1954 = vsel %vm431, %v1953, %v1918
        %v1955 = vsel %vm419, %v1867, %v1922
        %v1956 = vsel %vm421, %v1955, %v1926
        %v1957 = vsel %vm423, %v1956, %v1930
        %v1958 = vsel %vm425, %v1957, %v1934
        %v1959 = vsel %vm427, %v1958, %v1938
        %v1960 = vsel %vm429, %v1959, %v1942
        %v1961 = vsel %vm431, %v1960, %v1946
        %v1964 = vrot.slane %v1954, 4
        %v1965 = vrot.slane %v1961, 4
        %1968 = vst [vmem:[#allocation3 + $0x30] sm:$0xf0] %v1964
        %1969 = vst [vmem:[#allocation3 + $0x38] sm:$0xf0] %v1965
        %v1970 = vld [vmem:[#allocation2 + $0x2] sm:$0xff]
        %v1971 = vld [vmem:[#allocation2 + $0xa] sm:$0xff]
        %v1972 = vld [vmem:[#allocation2 + $0x1a] sm:$0xff]
        %v1973 = vld [vmem:[#allocation2 + $0x22] sm:$0xff]
        %v1974 = vld [vmem:[#allocation2 + $0x32] sm:$0xff]
        %v1975 = vld [vmem:[#allocation2 + $0x3a] sm:$0xff]
        %v1976 = vld [vmem:[#allocation2 + $0x4a] sm:$0xff]
        %v1977 = vld [vmem:[#allocation2 + $0x52] sm:$0xff]
        %1986 = vrot.lane.b32.xlu0 %v1970, 126
        %v1987 = vpop.permute.xlu0 %1986
        %1988 = vrot.lane.b32.xlu0 %v1971, 126
        %v1989 = vpop.permute.xlu0 %1988
        %1990 = vrot.lane.b32.xlu0 %v1972, 126
        %v1991 = vpop.permute.xlu0 %1990
        %1992 = vrot.lane.b32.xlu0 %v1973, 126
        %v1993 = vpop.permute.xlu0 %1992
        %1994 = vrot.lane.b32.xlu0 %v1974, 126
        %v1995 = vpop.permute.xlu0 %1994
        %1996 = vrot.lane.b32.xlu0 %v1975, 126
        %v1997 = vpop.permute.xlu0 %1996
        %1998 = vrot.lane.b32.xlu0 %v1976, 126
        %v1999 = vpop.permute.xlu0 %1998
        %2000 = vrot.lane.b32.xlu0 %v1977, 126
        %v2001 = vpop.permute.xlu0 %2000
        %v2010 = vrot.slane %v1995, 4
        %v2011 = vsel %vm251, %v2010, %v1987
        %v2012 = vrot.slane %v1987, 4
        %v2013 = vsel %vm251, %v1995, %v2012
        %v2015 = vunpack.c.l.s4 1983009808
        %v2016 = vunpack.c.0.s8 %v2015
        %v2017 = vperm.slane %v2011, %v2016
        %v2019 = vunpack.c.l.s4 1983009808
        %v2020 = vunpack.c.0.s8 %v2019
        %v2021 = vperm.slane %v2013, %v2020
        %v2022 = vrot.slane %v1999, 4
        %v2023 = vsel %vm251, %v2022, %v1991
        %v2024 = vrot.slane %v1991, 4
        %v2025 = vsel %vm251, %v1999, %v2024
        %v2027 = vunpack.c.l.s4 1983009808
        %v2028 = vunpack.c.0.s8 %v2027
        %v2029 = vperm.slane %v2023, %v2028
        %v2031 = vunpack.c.l.s4 1983009808
        %v2032 = vunpack.c.0.s8 %v2031
        %v2033 = vperm.slane %v2025, %v2032
        %v2034 = vrot.slane %v2029, 4
        %v2035 = vsel %vm251, %v2034, %v2017
        %v2036 = vrot.slane %v2017, 4
        %v2037 = vsel %vm251, %v2029, %v2036
        %v2039 = vunpack.c.l.s4 1934713408
        %v2040 = vunpack.c.0.s8 %v2039
        %v2041 = vperm.slane %v2035, %v2040
        %v2043 = vunpack.c.l.s4 1934713408
        %v2044 = vunpack.c.0.s8 %v2043
        %v2045 = vperm.slane %v2037, %v2044
        %v2046 = vrot.slane %v2033, 4
        %v2047 = vsel %vm251, %v2046, %v2021
        %v2048 = vrot.slane %v2021, 4
        %v2049 = vsel %vm251, %v2033, %v2048
        %v2051 = vunpack.c.l.s4 1934713408
        %v2052 = vunpack.c.0.s8 %v2051
        %v2053 = vperm.slane %v2047, %v2052
        %v2055 = vunpack.c.l.s4 1934713408
        %v2056 = vunpack.c.0.s8 %v2055
        %v2057 = vperm.slane %v2049, %v2056
        %v2058 = vrot.slane %v2041, 4
        %v2059 = vsel %vm251, 0.0, %v2058
        %v2060 = vrot.slane %v2045, 4
        %v2061 = vsel %vm251, 0.0, %v2060
        %v2062 = vrot.slane %v2053, 4
        %v2063 = vsel %vm251, 0.0, %v2062
        %v2064 = vrot.slane %v2057, 4
        %v2065 = vsel %vm251, 0.0, %v2064
        %v2066 = vrot.slane %v1997, 4
        %v2067 = vsel %vm251, %v2066, %v1989
        %v2068 = vrot.slane %v1989, 4
        %v2069 = vsel %vm251, %v1997, %v2068
        %v2071 = vunpack.c.l.s4 1983009808
        %v2072 = vunpack.c.0.s8 %v2071
        %v2073 = vperm.slane %v2067, %v2072
        %v2075 = vunpack.c.l.s4 1983009808
        %v2076 = vunpack.c.0.s8 %v2075
        %v2077 = vperm.slane %v2069, %v2076
        %v2078 = vrot.slane %v2001, 4
        %v2079 = vsel %vm251, %v2078, %v1993
        %v2080 = vrot.slane %v1993, 4
        %v2081 = vsel %vm251, %v2001, %v2080
        %v2083 = vunpack.c.l.s4 1983009808
        %v2084 = vunpack.c.0.s8 %v2083
        %v2085 = vperm.slane %v2079, %v2084
        %v2087 = vunpack.c.l.s4 1983009808
        %v2088 = vunpack.c.0.s8 %v2087
        %v2089 = vperm.slane %v2081, %v2088
        %v2090 = vrot.slane %v2085, 4
        %v2091 = vsel %vm251, %v2090, %v2073
        %v2092 = vrot.slane %v2073, 4
        %v2093 = vsel %vm251, %v2085, %v2092
        %v2095 = vunpack.c.l.s4 1934713408
        %v2096 = vunpack.c.0.s8 %v2095
        %v2097 = vperm.slane %v2091, %v2096
        %v2099 = vunpack.c.l.s4 1934713408
        %v2100 = vunpack.c.0.s8 %v2099
        %v2101 = vperm.slane %v2093, %v2100
        %v2102 = vrot.slane %v2089, 4
        %v2103 = vsel %vm251, %v2102, %v2077
        %v2104 = vrot.slane %v2077, 4
        %v2105 = vsel %vm251, %v2089, %v2104
        %v2107 = vunpack.c.l.s4 1934713408
        %v2108 = vunpack.c.0.s8 %v2107
        %v2109 = vperm.slane %v2103, %v2108
        %v2111 = vunpack.c.l.s4 1934713408
        %v2112 = vunpack.c.0.s8 %v2111
        %v2113 = vperm.slane %v2105, %v2112
        %v2114 = vrot.slane %v2097, 4
        %v2115 = vsel %vm251, 0.0, %v2114
        %v2116 = vrot.slane %v2101, 4
        %v2117 = vsel %vm251, 0.0, %v2116
        %v2118 = vrot.slane %v2109, 4
        %v2119 = vsel %vm251, 0.0, %v2118
        %v2120 = vrot.slane %v2113, 4
        %v2121 = vsel %vm251, 0.0, %v2120
        %2123 = vrot.lane.b32.xlu0 %v2059, 16
        %v2124 = vpop.permute.xlu0 %2123
        %2127 = vrot.lane.b32.xlu0 %v2045, 32
        %v2128 = vpop.permute.xlu0 %2127
        %2131 = vrot.lane.b32.xlu0 %v2061, 48
        %v2132 = vpop.permute.xlu0 %2131
        %2135 = vrot.lane.b32.xlu0 %v2053, 64
        %v2136 = vpop.permute.xlu0 %2135
        %2139 = vrot.lane.b32.xlu0 %v2063, 80
        %v2140 = vpop.permute.xlu0 %2139
        %2143 = vrot.lane.b32.xlu0 %v2057, 96
        %v2144 = vpop.permute.xlu0 %2143
        %2147 = vrot.lane.b32.xlu0 %v2065, 112
        %v2148 = vpop.permute.xlu0 %2147
        %2151 = vrot.lane.b32.xlu0 %v2115, 16
        %v2152 = vpop.permute.xlu0 %2151
        %2155 = vrot.lane.b32.xlu0 %v2101, 32
        %v2156 = vpop.permute.xlu0 %2155
        %2159 = vrot.lane.b32.xlu0 %v2117, 48
        %v2160 = vpop.permute.xlu0 %2159
        %2163 = vrot.lane.b32.xlu0 %v2109, 64
        %v2164 = vpop.permute.xlu0 %2163
        %2167 = vrot.lane.b32.xlu0 %v2119, 80
        %v2168 = vpop.permute.xlu0 %2167
        %2171 = vrot.lane.b32.xlu0 %v2113, 96
        %v2172 = vpop.permute.xlu0 %2171
        %2175 = vrot.lane.b32.xlu0 %v2121, 112
        %v2176 = vpop.permute.xlu0 %2175
        %v2178 = vsel %vm419, %v2041, %v2124
        %v2179 = vsel %vm421, %v2178, %v2128
        %v2180 = vsel %vm423, %v2179, %v2132
        %v2181 = vsel %vm425, %v2180, %v2136
        %v2182 = vsel %vm427, %v2181, %v2140
        %v2183 = vsel %vm429, %v2182, %v2144
        %v2184 = vsel %vm431, %v2183, %v2148
        %v2185 = vsel %vm419, %v2097, %v2152
        %v2186 = vsel %vm421, %v2185, %v2156
        %v2187 = vsel %vm423, %v2186, %v2160
        %v2188 = vsel %vm425, %v2187, %v2164
        %v2189 = vsel %vm427, %v2188, %v2168
        %v2190 = vsel %vm429, %v2189, %v2172
        %v2191 = vsel %vm431, %v2190, %v2176
        %2192 = vst [vmem:[#allocation3 + $0x40] sm:$0xf] %v2184
        %2193 = vst [vmem:[#allocation3 + $0x48] sm:$0xf] %v2191
        %v2194 = vld [vmem:[#allocation7] sm:$0xff]
        %v2195 = vld [vmem:[#allocation3] sm:$0xff]
        %v2196 = vld [vmem:[#allocation3 + $0x8] sm:$0xff]
        %v2197 = vld [vmem:[#allocation3 + $0x10] sm:$0xff]
        %v2198 = vld [vmem:[#allocation3 + $0x18] sm:$0xff]
        %v2199 = vld [vmem:[#allocation3 + $0x20] sm:$0xff]
        %v2200 = vld [vmem:[#allocation3 + $0x28] sm:$0xff]
        %v2201 = vld [vmem:[#allocation3 + $0x30] sm:$0xff]
        %v2202 = vld [vmem:[#allocation3 + $0x38] sm:$0xff]
        %v2203 = vld [vmem:[#allocation3 + $0x40] sm:$0xf]
        %v2204 = vld [vmem:[#allocation3 + $0x48] sm:$0xf]
        %vm2205 = vcmask 293888
        %v2207 = vsel %vm2205, %v2194, 0
        %vm2209 = vcmask 1043456
        %v2211 = vsel %vm2209, %v2203, 0
        %v2214 = vsel %vm2209, %v2204, 0
        %2216 = vmatpush.msra.mxu0 0.0
        %2217 = vmatpush.msra.mxu0 0.0
        %2218 = vmatpush.msra.mxu0 0.0
        %2219 = vmatpush.msra.mxu0 0.0
        %2220 = vmatpush.msra.mxu0 0.0
        %2221 = vmatpush.msra.mxu0 0.0
        %2222 = vmatpush.msra.mxu0 0.0
        %2223 = vmatpush.msra.mxu0 0.0
        %2224 = vmatpush.msra.mxu0 0.0
        %2225 = vmatpush.msra.mxu0 0.0
        %2226 = vmatpush.msra.mxu0 0.0
        %2227 = vmatpush.msra.mxu0 %v2211
        %2228 = vmatpush.msra.mxu0 %v2201
        %2229 = vmatpush.msra.mxu0 %v2199
        %2230 = vmatpush.msra.mxu0 %v2197
        %2231 = vmatpush.msra.mxu0 %v2195
        %2232 = vmatmul.f32.gmra.mxu0 %v2207
        %v2233 = vpop.f32.mrf.mxu0
        %v2234 = vadd.f32 0.0, %v2233
        %2235 = vdwg.mxu0
        %2236 = vmatpush.msra.mxu0 0.0
        %2237 = vmatpush.msra.mxu0 0.0
        %2238 = vmatpush.msra.mxu0 0.0
        %2239 = vmatpush.msra.mxu0 0.0
        %2240 = vmatpush.msra.mxu0 0.0
        %2241 = vmatpush.msra.mxu0 0.0
        %2242 = vmatpush.msra.mxu0 0.0
        %2243 = vmatpush.msra.mxu0 0.0
        %2244 = vmatpush.msra.mxu0 0.0
        %2245 = vmatpush.msra.mxu0 0.0
        %2246 = vmatpush.msra.mxu0 0.0
        %2247 = vmatpush.msra.mxu0 %v2214
        %2248 = vmatpush.msra.mxu0 %v2202
        %2249 = vmatpush.msra.mxu0 %v2200
        %2250 = vmatpush.msra.mxu0 %v2198
        %2251 = vmatpush.msra.mxu0 %v2196
        %2252 = vmatmul.f32.gmra.mxu0 %v2207
        %v2253 = vpop.f32.mrf.mxu0
        %v2254 = vadd.f32 0.0, %v2253
        %2255 = vdwg.mxu0
        %2256 = vst [vmem:[%s178] sm:$0xff] %v2234
        %2257 = vst [vmem:[%s178 + $0x8] sm:$0xff] %v2254
        %s2258 = sand.u32 %s75, 1
        %s2259 = scalar_lea.sflag [#allocation6], %s2258
        %s2260 = sand.u32 %s75, 1
        %s2261 = smul.addr %s2260, 16
        %s2262 = scalar_lea.vmem [#allocation9], %s2261
        // Predicated region
        $region37: #{tpu_custom_call.1} parent=27 // pred_check
          %p2263 = pneg %p85
        $region38: #{tpu_custom_call.1} parent=27 // pred_check_branch
          %2265 = sbr.rel (%p2263) target = $region40
        $region39: #{tpu_custom_call.1} parent=27 // pred_region
          %2267 = vsyncadd %s2259, 0
          %s2268 = smul.addr %s20, 2
          %s2269 = smul.addr %s2268, 8
          %s2270 = scalar_lea.hbm %s2, %s2269
          %s2272 = sshll.u32 %s2262, 4
          %s2273 = int_to_ptr.vmem [resolvable:$true] %s2272
          %s2274 = sshll.u32 %s2270, 4
          %s2275 = int_to_ptr.hbm [resolvable:$true] %s2274
          %2277 = dma.vmem_to_hbm [thread:$0]  %s2273, 256, %s2275, %s2259
        $region40: #{tpu_custom_call.1} parent=27 // pred_fallthru
          _
      $region28: #{tpu_custom_call.1} parent=5 // pred_fallthru
        _
      %p2278 = scmp.le.s32.totalorder 2, %s15
      // Predicated region
      $region41: #{tpu_custom_call.1} parent=5 // pred_check
        %p2279 = pneg %p2278
      $region42: #{tpu_custom_call.1} parent=5 // pred_check_branch
        %2281 = sbr.rel (%p2279) target = $region44
      $region43: #{tpu_custom_call.1} parent=5 // pred_region
        %s2282 = ssub.s32 %s15, 2
        // Predicated region
        $region45: #{tpu_custom_call.1} parent=43 // pred_check
          %p2283 = pneg %p91
        $region46: #{tpu_custom_call.1} parent=43 // pred_check_branch
          %2285 = sbr.rel (%p2283) target = $region48
        $region47: #{tpu_custom_call.1} parent=43 // pred_region
          %s2286 = sand.u32 %s76, 1
          %s2287 = scalar_lea.sflag [#allocation6], %s2286
          %s2288 = sand.u32 %s76, 1
          %s2289 = smul.addr %s2288, 16
          %s2290 = scalar_lea.vmem [#allocation9], %s2289
          %2292 = dma.done %s2287, 256
        $region48: #{tpu_custom_call.1} parent=43 // pred_fallthru
          _
      $region44: #{tpu_custom_call.1} parent=5 // pred_fallthru
        _
    $region6: #{tpu_custom_call.1} parent=1 // loop_footer
      %s19 = sadd.s32 1, %s15
    $region7: #{tpu_custom_call.1} parent=1 // loop_footer_branch
      %14 = sbr.rel target = $region3
    $region8: #{tpu_custom_call.1} parent=1 // loop_exit
      _
    %2293 = vsyncpa [#allocation5], 1
    %s2294 = scalar_lea.sflag [#allocation5], 1
    %2295 = vsyncpa %s2294, 1
    %2296 = vsyncpa [#allocation8], 1
    %2297 = vsyncpa [#allocation6], 1
    %s2298 = scalar_lea.sflag [#allocation6], 1
    %2299 = vsyncpa %s2298, 1

</llo_original>
